<compile_context>
chip_gen: v6e
topology: v6e:2x2x1
jax: 0.10.0
libtpu: 0.0.40
codegen_flags: <defaults>
</compile_context>

<pallas_src>
import functools

import jax
import jax.numpy as jnp
from jax import lax
from jax.experimental import pallas as pl
from jax.experimental.pallas import tpu as pltpu


def _cdiv(a, b):
    return -(-a // b)


def _round_up(x, m):
    return _cdiv(x, m) * m


# ----------------------------------------------------------------------------
# In-kernel helpers: explicit +-1 row shifts (direction-unambiguous).  The
# filled boundary row is a don't-care row (slab pad row, masked later).
# ----------------------------------------------------------------------------
def _shift_down(x):
    """out[p] = x[p-1]  (row above the center); row 0 <- zeros."""
    return jnp.concatenate([jnp.zeros_like(x[:1]), x[:-1]], axis=0)


def _shift_up(x):
    """out[p] = x[p+1]  (row below the center); last row <- zeros."""
    return jnp.concatenate([x[1:], jnp.zeros_like(x[:1])], axis=0)


# ----------------------------------------------------------------------------
# Kernel
# ----------------------------------------------------------------------------
def _output_block_kernel(x_ref, w1_ref, w2_ref, p_ref, o_ref,
                         *, H, Rin, B_blk, K1p, No, compute_dtype):
    Mb = B_blk * Rin

    # Packed per-layer bias / PReLU slopes (lane-tiled; conv_1 bias is zeroed
    # on the padded border pixel columns so y1's column padding stays 0).
    b1 = p_ref[0, :K1p]
    a1 = p_ref[1, :K1p]
    b2 = p_ref[2, :No]
    a2 = p_ref[3, :No]

    # Row-validity mask: data rows are slab-relative rows 1..H.  (Replaces the
    # old zero-row concatenate/re-pad of y1 with one select per vreg.)
    rid = lax.broadcasted_iota(jnp.int32, (Mb, 1), 0)
    valid = (rid >= 1) & (rid <= H)
    for b in range(1, B_blk):           # B_blk is a small compile-time constant
        lo = b * Rin
        valid = valid | ((rid >= lo + 1) & (rid <= lo + H))

    x = x_ref[...].astype(compute_dtype)          # (Mb, W*Cin)
    xu = _shift_down(x)                           # ky = 0 tap (row above)
    xd = _shift_up(x)                             # ky = 2 tap (row below)

    # ---- conv_1: 3 banded matmuls (one per kernel row).  Output lands in
    #      padded-column layout (Mb, (W+2)*Cin) with zero border columns. ----
    acc1 = (jnp.dot(xu, w1_ref[0], preferred_element_type=jnp.float32)
            + jnp.dot(x, w1_ref[1], preferred_element_type=jnp.float32)
            + jnp.dot(xd, w1_ref[2], preferred_element_type=jnp.float32))
    y1 = acc1 + b1[None, :]
    y1 = jnp.where(y1 >= 0, y1, a1[None, :] * y1)     # PReLU
    y1 = jnp.where(valid, y1, 0.0)                    # zero pad rows AFTER bias+PReLU

    # ---- conv_2: 3 banded matmuls -> dense (Mb, W*Cout) ---------------------
    y1c = y1.astype(compute_dtype)
    y1u = _shift_down(y1c)
    y1d = _shift_up(y1c)
    acc2 = (jnp.dot(y1u, w2_ref[0], preferred_element_type=jnp.float32)
            + jnp.dot(y1c, w2_ref[1], preferred_element_type=jnp.float32)
            + jnp.dot(y1d, w2_ref[2], preferred_element_type=jnp.float32))
    y2 = acc2 + b2[None, :]
    y2 = jnp.where(y2 >= 0, y2, a2[None, :] * y2)

    o_ref[...] = y2.astype(o_ref.dtype)           # lane-dense (Mb, W*Cout) store


# ----------------------------------------------------------------------------
# One-time (hoisted) weight preprocessing: banded / Toeplitz weights + packed
# bias / PReLU-slope rows.  Reusable across any number of forward calls.
# ----------------------------------------------------------------------------
def _banded_conv1_weight(w_hwio, W, Wp, Cin):
    """(3,3,Cin,Cin) HWIO -> (3, W*Cin, Wp*Cin).

    Input columns are UNPADDED pixel coords; output columns are padded pixel
    coords and the two border pixel columns of the output are identically 0."""
    w_in = jnp.arange(W)[:, None]               # unpadded input pixel
    wp_out = jnp.arange(Wp)[None, :]            # padded output pixel
    dx = w_in - wp_out + 2                      # kernel column index
    valid = (dx >= 0) & (dx <= 2) & (wp_out >= 1) & (wp_out <= W)
    dx_c = jnp.clip(dx, 0, 2)
    # (3, W_in, Wp_out, Cin, Cin)
    b = w_hwio[:, dx_c, :, :] * valid[None, :, :, None, None].astype(w_hwio.dtype)
    # -> (3, W_in, Cin, Wp_out, Cin) -> (3, W*Cin, Wp*Cin)
    return jnp.transpose(b, (0, 1, 3, 2, 4)).reshape(3, W * Cin, Wp * Cin)


def _banded_conv2_weight(w_hwio, W, Wp, Cin, Cout):
    """(3,3,Cin,Cout) HWIO -> (3, Wp*Cin, W*Cout) (dense output columns)."""
    wp_in = jnp.arange(Wp)[:, None]             # padded input pixel
    w_out = jnp.arange(W)[None, :]              # dense output pixel
    dx = wp_in - w_out
    valid = (dx >= 0) & (dx <= 2)
    dx_c = jnp.clip(dx, 0, 2)
    b = w_hwio[:, dx_c, :, :] * valid[None, :, :, None, None].astype(w_hwio.dtype)
    return jnp.transpose(b, (0, 1, 3, 2, 4)).reshape(3, Wp * Cin, W * Cout)


def prepare_output_block_params(w1_hwio, b1, a1, w2_hwio, b2, a2, *,
                                image_width, compute_dtype=jnp.float32):
    """Build banded weights + packed bias/slopes once (per weight set / width)."""
    W = int(image_width)
    Wp = W + 2
    Cin = w1_hwio.shape[2]
    Cout = w2_hwio.shape[3]
    K1p, No = Wp * Cin, W * Cout
    L = max(K1p, No)

    w1b = _banded_conv1_weight(w1_hwio, W, Wp, Cin).astype(compute_dtype)
    w2b = _banded_conv2_weight(w2_hwio, W, Wp, Cin, Cout).astype(compute_dtype)

    # conv_1 bias zeroed on border pixel columns so the column padding for
    # conv_2 stays exactly zero after bias + PReLU.
    col_valid = ((jnp.arange(Wp) >= 1) & (jnp.arange(Wp) <= W)).astype(jnp.float32)
    b1_cols = (col_valid[:, None] * b1.astype(jnp.float32)[None, :]).reshape(K1p)
    a1_cols = jnp.tile(a1.astype(jnp.float32), Wp)
    b2_cols = jnp.tile(b2.astype(jnp.float32), W)
    a2_cols = jnp.tile(a2.astype(jnp.float32), W)

    def _pad_l(v):
        return jnp.pad(v, (0, L - v.shape[0]))

    bias_slopes = jnp.stack([_pad_l(b1_cols), _pad_l(a1_cols),
                             _pad_l(b2_cols), _pad_l(a2_cols)])   # (4, L)

    return dict(w1b=w1b, w2b=w2b, bias_slopes=bias_slopes,
                W=W, Cin=Cin, Cout=Cout, compute_dtype=compute_dtype)


# ----------------------------------------------------------------------------
# Forward wrapper
# ----------------------------------------------------------------------------
def _looks_like_two_core_chip():
    try:
        kind = jax.devices()[0].device_kind.lower()
    except Exception:
        return False
    return "v7" in kind     # v7x has 2 TensorCores per chip


def output_block_pallas(x_nhwc, prep, *, batch_block=None):
    """x_nhwc: (N, H, W, Cin) f32; prep: output of prepare_output_block_params.
    Returns (N, H, W, Cout) f32."""
    N, H, W, Cin = x_nhwc.shape
    assert W == prep["W"] and Cin == prep["Cin"], "prep built for different shape"
    Cout = prep["Cout"]
    Wp = W + 2
    K0, K1p, No = W * Cin, Wp * Cin, W * Cout
    L = prep["bias_slopes"].shape[-1]

    # Per-image slab: row 0 zero, rows 1..H data, zero tail to a multiple of 8.
    Rin = _round_up(H + 2, 8)

    # ---- choose how many batch elements each grid step stacks into M --------
    if batch_block is None:
        batch_block = max(1, min(N, 256 // Rin))      # target M ~ 128..256 rows
        n_steps = _cdiv(N, batch_block)
        if _looks_like_two_core_chip() and N >= 2:
            n_steps = max(n_steps, 2)                 # keep both v7x cores busy
        batch_block = _cdiv(N, n_steps)
    batch_block = max(1, int(batch_block))
    n_steps = _cdiv(N, batch_block)
    Npad = n_steps * batch_block
    Mb = batch_block * Rin

    # ---- input prep: only a row pad + reshape (no width pad, no im2col) -----
    x2d = x_nhwc.reshape(N, H, K0).astype(jnp.float32)
    x2d = jnp.pad(x2d, ((0, Npad - N), (1, Rin - H - 1), (0, 0)))
    x2d = x2d.reshape(Npad * Rin, K0)

    kernel = functools.partial(
        _output_block_kernel, H=H, Rin=Rin, B_blk=batch_block,
        K1p=K1p, No=No, compute_dtype=prep["compute_dtype"])

    def _run(single_buffer_invariant):
        inv_kwargs = (dict(pipeline_mode=pl.Buffered(buffer_count=1))
                      if single_buffer_invariant else {})
        grid_spec = pltpu.PrefetchScalarGridSpec(
            num_scalar_prefetch=0,
            grid=(n_steps,),
            in_specs=[
                pl.BlockSpec((Mb, K0), lambda i: (i, 0)),
                pl.BlockSpec((3, K0, K1p), lambda i: (0, 0, 0), **inv_kwargs),
                pl.BlockSpec((3, K1p, No), lambda i: (0, 0, 0), **inv_kwargs),
                pl.BlockSpec((4, L), lambda i: (0, 0), **inv_kwargs),
            ],
            out_specs=pl.BlockSpec((Mb, No), lambda i: (i, 0)),
        )
        return pl.pallas_call(
            kernel,
            out_shape=jax.ShapeDtypeStruct((Npad * Rin, No), jnp.float32),
            grid_spec=grid_spec,
            compiler_params=pltpu.CompilerParams(
                dimension_semantics=("parallel",)),   # megacore split on v7x
        )(x2d, prep["w1b"], prep["w2b"], prep["bias_slopes"])

    try:
        out2d = _run(True)
    except Exception:
        # Fallback for jax versions without pipeline_mode / Buffered(1) support.
        out2d = _run(False)

    out = out2d.reshape(Npad, Rin, No)[:N, 1:H + 1, :]
    return out.reshape(N, H, W, Cout)


# ----------------------------------------------------------------------------
# Plain-JAX reference reproducing the PyTorch forward (NCHW)
# ----------------------------------------------------------------------------
def _reference_nchw(x_nchw, w1_oihw, b1, a1, w2_oihw, b2, a2):
    def conv(x, w, b):
        y = lax.conv_general_dilated(
            x, w, window_strides=(1, 1), padding="SAME",
            dimension_numbers=("NCHW", "OIHW", "NCHW"))
        return y + b[None, :, None, None]

    def prelu(y, a):
        return jnp.where(y >= 0, y, a[None, :, None, None] * y)

    y = prelu(conv(x_nchw, w1_oihw, b1), a1)
    return prelu(conv(y, w2_oihw, b2), a2)


if __name__ == "__main__":
    N, Cin, Cout, H, W = 2, 4, 8, 16, 16

    key = jax.random.PRNGKey(0)
    k1, k2, k3, k4, k5, k6, k7 = jax.random.split(key, 7)

    # PyTorch-layout parameters (OIHW conv weights), deterministic init.
    w1_oihw = jax.random.normal(k1, (Cin, Cin, 3, 3), jnp.float32) * 0.1
    b1 = jax.random.normal(k2, (Cin,), jnp.float32) * 0.1
    a1 = 0.25 + 0.05 * jax.random.normal(k3, (Cin,), jnp.float32)   # PReLU slopes
    w2_oihw = jax.random.normal(k4, (Cout, Cin, 3, 3), jnp.float32) * 0.1
    b2 = jax.random.normal(k5, (Cout,), jnp.float32) * 0.1
    a2 = 0.25 + 0.05 * jax.random.normal(k6, (Cout,), jnp.float32)

    # Input in PyTorch NCHW convention.
    x_nchw = jax.random.normal(k7, (N, Cin, H, W), jnp.float32)

    # Convert to kernel layouts: NHWC input, HWIO weights.
    x_nhwc = jnp.transpose(x_nchw, (0, 2, 3, 1))
    w1_hwio = jnp.transpose(w1_oihw, (2, 3, 1, 0))
    w2_hwio = jnp.transpose(w2_oihw, (2, 3, 1, 0))

    # One-time preprocessing (hoisted out of the per-call path).
    prep = prepare_output_block_params(w1_hwio, b1, a1, w2_hwio, b2, a2,
                                       image_width=W)

    out_nhwc = output_block_pallas(x_nhwc, prep)
    out_nhwc = jax.block_until_ready(out_nhwc)

    # Verify against the plain-JAX (PyTorch-equivalent) reference.
    ref_nchw = _reference_nchw(x_nchw, w1_oihw, b1, a1, w2_oihw, b2, a2)
    out_nchw = jnp.transpose(out_nhwc, (0, 3, 1, 2))
    assert out_nchw.shape == (N, Cout, H, W)
    assert jnp.allclose(out_nchw, ref_nchw, atol=1e-4, rtol=1e-4), (
        float(jnp.max(jnp.abs(out_nchw - ref_nchw))))

    print("KERNEL_OK")
</pallas_src>

<mosaic_0001>
module attributes {stable_mosaic.version = 11 : i64} {
  func.func @_output_block_kernel(%arg0: i32, %arg1: memref<48x64xf32, #tpu.memory_space<vmem>>, %arg2: memref<3x64x72xf32, #tpu.memory_space<vmem>>, %arg3: memref<3x72x128xf32, #tpu.memory_space<vmem>>, %arg4: memref<4x128xf32, #tpu.memory_space<vmem>>, %arg5: memref<48x128xf32, #tpu.memory_space<vmem>>) attributes {dimension_semantics = [#tpu.dimension_semantics<parallel>], iteration_bounds = array<i64: 1>, scalar_prefetch = 0 : i64, scratch_operands = 0 : i64, tpu.core_type = #tpu.core_type<tc>, window_params = [{transform_indices = @transform_0, window_bounds = array<i64: 48, 64>}, {pipeline_mode = #tpu.pipeline_mode<synchronous>, transform_indices = @transform_1, window_bounds = array<i64: 3, 64, 72>}, {pipeline_mode = #tpu.pipeline_mode<synchronous>, transform_indices = @transform_2, window_bounds = array<i64: 3, 72, 128>}, {pipeline_mode = #tpu.pipeline_mode<synchronous>, transform_indices = @transform_3, window_bounds = array<i64: 4, 128>}, {transform_indices = @transform_4, window_bounds = array<i64: 48, 128>}]} {
    %c0 = arith.constant 0 : index
    %c0_0 = arith.constant 0 : index
    %0 = vector.load %arg4[%c0, %c0_0] : memref<4x128xf32, #tpu.memory_space<vmem>>, vector<1x72xf32>
    %1 = vector.shape_cast %0 : vector<1x72xf32> to vector<72xf32>
    %c1 = arith.constant 1 : index
    %c0_1 = arith.constant 0 : index
    %2 = vector.load %arg4[%c1, %c0_1] : memref<4x128xf32, #tpu.memory_space<vmem>>, vector<1x72xf32>
    %3 = vector.shape_cast %2 : vector<1x72xf32> to vector<72xf32>
    %c2 = arith.constant 2 : index
    %c0_2 = arith.constant 0 : index
    %4 = vector.load %arg4[%c2, %c0_2] : memref<4x128xf32, #tpu.memory_space<vmem>>, vector<1x128xf32>
    %5 = vector.shape_cast %4 : vector<1x128xf32> to vector<128xf32>
    %c3 = arith.constant 3 : index
    %c0_3 = arith.constant 0 : index
    %6 = vector.load %arg4[%c3, %c0_3] : memref<4x128xf32, #tpu.memory_space<vmem>>, vector<1x128xf32>
    %7 = vector.shape_cast %6 : vector<1x128xf32> to vector<128xf32>
    %8 = tpu.iota {dimensions = array<i32: 0>} : vector<48x1xi32>
    %c1_i32 = arith.constant 1 : i32
    %9 = vector.broadcast %c1_i32 : i32 to vector<48x1xi32>
    %10 = arith.cmpi sge, %8, %9 : vector<48x1xi32>
    %c16_i32 = arith.constant 16 : i32
    %11 = vector.broadcast %c16_i32 : i32 to vector<48x1xi32>
    %12 = arith.cmpi sle, %8, %11 : vector<48x1xi32>
    %13 = arith.andi %10, %12 : vector<48x1xi1>
    %c25_i32 = arith.constant 25 : i32
    %14 = vector.broadcast %c25_i32 : i32 to vector<48x1xi32>
    %15 = arith.cmpi sge, %8, %14 : vector<48x1xi32>
    %c40_i32 = arith.constant 40 : i32
    %16 = vector.broadcast %c40_i32 : i32 to vector<48x1xi32>
    %17 = arith.cmpi sle, %8, %16 : vector<48x1xi32>
    %18 = arith.andi %15, %17 : vector<48x1xi1>
    %19 = arith.ori %13, %18 : vector<48x1xi1>
    %c0_4 = arith.constant 0 : index
    %c0_5 = arith.constant 0 : index
    %20 = vector.load %arg1[%c0_4, %c0_5] : memref<48x64xf32, #tpu.memory_space<vmem>>, vector<48x64xf32>
    %cst = arith.constant 0.000000e+00 : f32
    %21 = vector.broadcast %cst : f32 to vector<1x64xf32>
    %22 = vector.extract_strided_slice %20 {offsets = [0, 0], sizes = [47, 64], strides = [1, 1]} : vector<48x64xf32> to vector<47x64xf32>
    %23 = tpu.concatenate %21, %22 in 0 : vector<1x64xf32>, vector<47x64xf32> -> vector<48x64xf32>
    %24 = vector.extract_strided_slice %20 {offsets = [1, 0], sizes = [47, 64], strides = [1, 1]} : vector<48x64xf32> to vector<47x64xf32>
    %cst_6 = arith.constant 0.000000e+00 : f32
    %25 = vector.broadcast %cst_6 : f32 to vector<1x64xf32>
    %26 = tpu.concatenate %24, %25 in 0 : vector<47x64xf32>, vector<1x64xf32> -> vector<48x64xf32>
    %c0_7 = arith.constant 0 : index
    %c0_8 = arith.constant 0 : index
    %c0_9 = arith.constant 0 : index
    %27 = vector.load %arg2[%c0_7, %c0_8, %c0_9] : memref<3x64x72xf32, #tpu.memory_space<vmem>>, vector<1x64x72xf32>
    %28 = vector.shape_cast %27 : vector<1x64x72xf32> to vector<64x72xf32>
    %cst_10 = arith.constant dense<0.000000e+00> : vector<48x72xf32>
    %29 = tpu.matmul %23, %28, %cst_10 {dimension_numbers = #tpu.dot_dimension_numbers<[1], [0], [0], [1], [0, 0, 1, 1], [], []>} : vector<48x64xf32>, vector<64x72xf32>, vector<48x72xf32> -> vector<48x72xf32>
    %c1_11 = arith.constant 1 : index
    %c0_12 = arith.constant 0 : index
    %c0_13 = arith.constant 0 : index
    %30 = vector.load %arg2[%c1_11, %c0_12, %c0_13] : memref<3x64x72xf32, #tpu.memory_space<vmem>>, vector<1x64x72xf32>
    %31 = vector.shape_cast %30 : vector<1x64x72xf32> to vector<64x72xf32>
    %cst_14 = arith.constant dense<0.000000e+00> : vector<48x72xf32>
    %32 = tpu.matmul %20, %31, %cst_14 {dimension_numbers = #tpu.dot_dimension_numbers<[1], [0], [0], [1], [0, 0, 1, 1], [], []>} : vector<48x64xf32>, vector<64x72xf32>, vector<48x72xf32> -> vector<48x72xf32>
    %33 = arith.addf %29, %32 : vector<48x72xf32>
    %c2_15 = arith.constant 2 : index
    %c0_16 = arith.constant 0 : index
    %c0_17 = arith.constant 0 : index
    %34 = vector.load %arg2[%c2_15, %c0_16, %c0_17] : memref<3x64x72xf32, #tpu.memory_space<vmem>>, vector<1x64x72xf32>
    %35 = vector.shape_cast %34 : vector<1x64x72xf32> to vector<64x72xf32>
    %cst_18 = arith.constant dense<0.000000e+00> : vector<48x72xf32>
    %36 = tpu.matmul %26, %35, %cst_18 {dimension_numbers = #tpu.dot_dimension_numbers<[1], [0], [0], [1], [0, 0, 1, 1], [], []>} : vector<48x64xf32>, vector<64x72xf32>, vector<48x72xf32> -> vector<48x72xf32>
    %37 = arith.addf %33, %36 : vector<48x72xf32>
    %38 = vector.shape_cast %1 : vector<72xf32> to vector<1x72xf32>
    %39 = vector.broadcast %38 : vector<1x72xf32> to vector<48x72xf32>
    %40 = arith.addf %37, %39 : vector<48x72xf32>
    %cst_19 = arith.constant 0.000000e+00 : f32
    %41 = vector.broadcast %cst_19 : f32 to vector<48x72xf32>
    %42 = arith.cmpf oge, %40, %41 : vector<48x72xf32>
    %43 = vector.shape_cast %3 : vector<72xf32> to vector<1x72xf32>
    %44 = vector.broadcast %43 : vector<1x72xf32> to vector<48x72xf32>
    %45 = arith.mulf %44, %40 : vector<48x72xf32>
    %46 = arith.select %42, %40, %45 : vector<48x72xi1>, vector<48x72xf32>
    %cst_20 = arith.constant 0.000000e+00 : f32
    %47 = vector.shape_cast %19 : vector<48x1xi1> to vector<48x1xi1>
    %48 = vector.broadcast %47 : vector<48x1xi1> to vector<48x72xi1>
    %49 = vector.broadcast %cst_20 : f32 to vector<48x72xf32>
    %50 = arith.select %48, %46, %49 : vector<48x72xi1>, vector<48x72xf32>
    %cst_21 = arith.constant 0.000000e+00 : f32
    %51 = vector.broadcast %cst_21 : f32 to vector<1x72xf32>
    %52 = vector.extract_strided_slice %50 {offsets = [0, 0], sizes = [47, 72], strides = [1, 1]} : vector<48x72xf32> to vector<47x72xf32>
    %53 = tpu.concatenate %51, %52 in 0 : vector<1x72xf32>, vector<47x72xf32> -> vector<48x72xf32>
    %54 = vector.extract_strided_slice %50 {offsets = [1, 0], sizes = [47, 72], strides = [1, 1]} : vector<48x72xf32> to vector<47x72xf32>
    %cst_22 = arith.constant 0.000000e+00 : f32
    %55 = vector.broadcast %cst_22 : f32 to vector<1x72xf32>
    %56 = tpu.concatenate %54, %55 in 0 : vector<47x72xf32>, vector<1x72xf32> -> vector<48x72xf32>
    %c0_23 = arith.constant 0 : index
    %c0_24 = arith.constant 0 : index
    %c0_25 = arith.constant 0 : index
    %57 = vector.load %arg3[%c0_23, %c0_24, %c0_25] : memref<3x72x128xf32, #tpu.memory_space<vmem>>, vector<1x72x128xf32>
    %58 = vector.shape_cast %57 : vector<1x72x128xf32> to vector<72x128xf32>
    %cst_26 = arith.constant dense<0.000000e+00> : vector<48x128xf32>
    %59 = tpu.matmul %53, %58, %cst_26 {dimension_numbers = #tpu.dot_dimension_numbers<[1], [0], [0], [1], [0, 0, 1, 1], [], []>} : vector<48x72xf32>, vector<72x128xf32>, vector<48x128xf32> -> vector<48x128xf32>
    %c1_27 = arith.constant 1 : index
    %c0_28 = arith.constant 0 : index
    %c0_29 = arith.constant 0 : index
    %60 = vector.load %arg3[%c1_27, %c0_28, %c0_29] : memref<3x72x128xf32, #tpu.memory_space<vmem>>, vector<1x72x128xf32>
    %61 = vector.shape_cast %60 : vector<1x72x128xf32> to vector<72x128xf32>
    %cst_30 = arith.constant dense<0.000000e+00> : vector<48x128xf32>
    %62 = tpu.matmul %50, %61, %cst_30 {dimension_numbers = #tpu.dot_dimension_numbers<[1], [0], [0], [1], [0, 0, 1, 1], [], []>} : vector<48x72xf32>, vector<72x128xf32>, vector<48x128xf32> -> vector<48x128xf32>
    %63 = arith.addf %59, %62 : vector<48x128xf32>
    %c2_31 = arith.constant 2 : index
    %c0_32 = arith.constant 0 : index
    %c0_33 = arith.constant 0 : index
    %64 = vector.load %arg3[%c2_31, %c0_32, %c0_33] : memref<3x72x128xf32, #tpu.memory_space<vmem>>, vector<1x72x128xf32>
    %65 = vector.shape_cast %64 : vector<1x72x128xf32> to vector<72x128xf32>
    %cst_34 = arith.constant dense<0.000000e+00> : vector<48x128xf32>
    %66 = tpu.matmul %56, %65, %cst_34 {dimension_numbers = #tpu.dot_dimension_numbers<[1], [0], [0], [1], [0, 0, 1, 1], [], []>} : vector<48x72xf32>, vector<72x128xf32>, vector<48x128xf32> -> vector<48x128xf32>
    %67 = arith.addf %63, %66 : vector<48x128xf32>
    %68 = vector.shape_cast %5 : vector<128xf32> to vector<1x128xf32>
    %69 = vector.broadcast %68 : vector<1x128xf32> to vector<48x128xf32>
    %70 = arith.addf %67, %69 : vector<48x128xf32>
    %cst_35 = arith.constant 0.000000e+00 : f32
    %71 = vector.broadcast %cst_35 : f32 to vector<48x128xf32>
    %72 = arith.cmpf oge, %70, %71 : vector<48x128xf32>
    %73 = vector.shape_cast %7 : vector<128xf32> to vector<1x128xf32>
    %74 = vector.broadcast %73 : vector<1x128xf32> to vector<48x128xf32>
    %75 = arith.mulf %74, %70 : vector<48x128xf32>
    %76 = arith.select %72, %70, %75 : vector<48x128xi1>, vector<48x128xf32>
    %c0_36 = arith.constant 0 : index
    %c0_37 = arith.constant 0 : index
    %77 = vector.load %arg5[%c0_36, %c0_37] : memref<48x128xf32, #tpu.memory_space<vmem>>, vector<48x128xf32>
    tpu.vector_store %arg5[%c0_36, %c0_37], %76 {strides = array<i32>} : memref<48x128xf32, #tpu.memory_space<vmem>>, vector<48x128xf32>,
    return
  }
  func.func @transform_0(%arg0: i32) -> (i32, i32) {
    %c0_i32 = arith.constant 0 : i32
    %c0_i32_0 = arith.constant 0 : i32
    return %arg0, %c0_i32 : i32, i32
  }
  func.func @transform_1(%arg0: i32) -> (i32, i32, i32) {
    %c0_i32 = arith.constant 0 : i32
    %c0_i32_0 = arith.constant 0 : i32
    %c0_i32_1 = arith.constant 0 : i32
    %c0_i32_2 = arith.constant 0 : i32
    return %c0_i32, %c0_i32_0, %c0_i32_1 : i32, i32, i32
  }
  func.func @transform_2(%arg0: i32) -> (i32, i32, i32) {
    %c0_i32 = arith.constant 0 : i32
    %c0_i32_0 = arith.constant 0 : i32
    %c0_i32_1 = arith.constant 0 : i32
    %c0_i32_2 = arith.constant 0 : i32
    return %c0_i32, %c0_i32_0, %c0_i32_1 : i32, i32, i32
  }
  func.func @transform_3(%arg0: i32) -> (i32, i32) {
    %c0_i32 = arith.constant 0 : i32
    %c0_i32_0 = arith.constant 0 : i32
    %c0_i32_1 = arith.constant 0 : i32
    return %c0_i32, %c0_i32_0 : i32, i32
  }
  func.func @transform_4(%arg0: i32) -> (i32, i32) {
    %c0_i32 = arith.constant 0 : i32
    %c0_i32_0 = arith.constant 0 : i32
    return %arg0, %c0_i32 : i32, i32
  }
}

module attributes {stable_mosaic.version = 11 : i64} {
  func.func @_output_block_kernel(%arg0: i32, %arg1: memref<48x64xf32, #tpu.memory_space<vmem>>, %arg2: memref<3x64x72xf32, #tpu.memory_space<vmem>>, %arg3: memref<3x72x128xf32, #tpu.memory_space<vmem>>, %arg4: memref<4x128xf32, #tpu.memory_space<vmem>>, %arg5: memref<48x128xf32, #tpu.memory_space<vmem>>) attributes {dimension_semantics = [#tpu.dimension_semantics<parallel>], iteration_bounds = array<i64: 1>, scalar_prefetch = 0 : i64, scratch_operands = 0 : i64, tpu.core_type = #tpu.core_type<tc>, window_params = [{transform_indices = @transform_0, window_bounds = array<i64: 48, 64>}, {pipeline_mode = #tpu.pipeline_mode<synchronous>, transform_indices = @transform_1, window_bounds = array<i64: 3, 64, 72>}, {pipeline_mode = #tpu.pipeline_mode<synchronous>, transform_indices = @transform_2, window_bounds = array<i64: 3, 72, 128>}, {pipeline_mode = #tpu.pipeline_mode<synchronous>, transform_indices = @transform_3, window_bounds = array<i64: 4, 128>}, {transform_indices = @transform_4, window_bounds = array<i64: 48, 128>}]} {
    %c0 = arith.constant 0 : index
    %c0_0 = arith.constant 0 : index
    %0 = vector.load %arg4[%c0, %c0_0] : memref<4x128xf32, #tpu.memory_space<vmem>>, vector<1x72xf32>
    %1 = vector.shape_cast %0 : vector<1x72xf32> to vector<72xf32>
    %c1 = arith.constant 1 : index
    %c0_1 = arith.constant 0 : index
    %2 = vector.load %arg4[%c1, %c0_1] : memref<4x128xf32, #tpu.memory_space<vmem>>, vector<1x72xf32>
    %3 = vector.shape_cast %2 : vector<1x72xf32> to vector<72xf32>
    %c2 = arith.constant 2 : index
    %c0_2 = arith.constant 0 : index
    %4 = vector.load %arg4[%c2, %c0_2] : memref<4x128xf32, #tpu.memory_space<vmem>>, vector<1x128xf32>
    %5 = vector.shape_cast %4 : vector<1x128xf32> to vector<128xf32>
    %c3 = arith.constant 3 : index
    %c0_3 = arith.constant 0 : index
    %6 = vector.load %arg4[%c3, %c0_3] : memref<4x128xf32, #tpu.memory_space<vmem>>, vector<1x128xf32>
    %7 = vector.shape_cast %6 : vector<1x128xf32> to vector<128xf32>
    %8 = tpu.iota {dimensions = array<i32: 0>} : vector<48x1xi32>
    %c1_i32 = arith.constant 1 : i32
    %9 = vector.broadcast %c1_i32 : i32 to vector<48x1xi32>
    %10 = arith.cmpi sge, %8, %9 : vector<48x1xi32>
    %c16_i32 = arith.constant 16 : i32
    %11 = vector.broadcast %c16_i32 : i32 to vector<48x1xi32>
    %12 = arith.cmpi sle, %8, %11 : vector<48x1xi32>
    %13 = arith.andi %10, %12 : vector<48x1xi1>
    %c25_i32 = arith.constant 25 : i32
    %14 = vector.broadcast %c25_i32 : i32 to vector<48x1xi32>
    %15 = arith.cmpi sge, %8, %14 : vector<48x1xi32>
    %c40_i32 = arith.constant 40 : i32
    %16 = vector.broadcast %c40_i32 : i32 to vector<48x1xi32>
    %17 = arith.cmpi sle, %8, %16 : vector<48x1xi32>
    %18 = arith.andi %15, %17 : vector<48x1xi1>
    %19 = arith.ori %13, %18 : vector<48x1xi1>
    %c0_4 = arith.constant 0 : index
    %c0_5 = arith.constant 0 : index
    %20 = vector.load %arg1[%c0_4, %c0_5] : memref<48x64xf32, #tpu.memory_space<vmem>>, vector<48x64xf32>
    %cst = arith.constant 0.000000e+00 : f32
    %21 = vector.broadcast %cst : f32 to vector<1x64xf32>
    %22 = vector.extract_strided_slice %20 {offsets = [0, 0], sizes = [47, 64], strides = [1, 1]} : vector<48x64xf32> to vector<47x64xf32>
    %23 = tpu.concatenate %21, %22 in 0 : vector<1x64xf32>, vector<47x64xf32> -> vector<48x64xf32>
    %24 = vector.extract_strided_slice %20 {offsets = [1, 0], sizes = [47, 64], strides = [1, 1]} : vector<48x64xf32> to vector<47x64xf32>
    %cst_6 = arith.constant 0.000000e+00 : f32
    %25 = vector.broadcast %cst_6 : f32 to vector<1x64xf32>
    %26 = tpu.concatenate %24, %25 in 0 : vector<47x64xf32>, vector<1x64xf32> -> vector<48x64xf32>
    %c0_7 = arith.constant 0 : index
    %c0_8 = arith.constant 0 : index
    %c0_9 = arith.constant 0 : index
    %27 = vector.load %arg2[%c0_7, %c0_8, %c0_9] : memref<3x64x72xf32, #tpu.memory_space<vmem>>, vector<1x64x72xf32>
    %28 = vector.shape_cast %27 : vector<1x64x72xf32> to vector<64x72xf32>
    %cst_10 = arith.constant dense<0.000000e+00> : vector<48x72xf32>
    %29 = tpu.matmul %23, %28, %cst_10 {dimension_numbers = #tpu.dot_dimension_numbers<[1], [0], [0], [1], [0, 0, 1, 1], [], []>} : vector<48x64xf32>, vector<64x72xf32>, vector<48x72xf32> -> vector<48x72xf32>
    %c1_11 = arith.constant 1 : index
    %c0_12 = arith.constant 0 : index
    %c0_13 = arith.constant 0 : index
    %30 = vector.load %arg2[%c1_11, %c0_12, %c0_13] : memref<3x64x72xf32, #tpu.memory_space<vmem>>, vector<1x64x72xf32>
    %31 = vector.shape_cast %30 : vector<1x64x72xf32> to vector<64x72xf32>
    %cst_14 = arith.constant dense<0.000000e+00> : vector<48x72xf32>
    %32 = tpu.matmul %20, %31, %cst_14 {dimension_numbers = #tpu.dot_dimension_numbers<[1], [0], [0], [1], [0, 0, 1, 1], [], []>} : vector<48x64xf32>, vector<64x72xf32>, vector<48x72xf32> -> vector<48x72xf32>
    %33 = arith.addf %29, %32 : vector<48x72xf32>
    %c2_15 = arith.constant 2 : index
    %c0_16 = arith.constant 0 : index
    %c0_17 = arith.constant 0 : index
    %34 = vector.load %arg2[%c2_15, %c0_16, %c0_17] : memref<3x64x72xf32, #tpu.memory_space<vmem>>, vector<1x64x72xf32>
    %35 = vector.shape_cast %34 : vector<1x64x72xf32> to vector<64x72xf32>
    %cst_18 = arith.constant dense<0.000000e+00> : vector<48x72xf32>
    %36 = tpu.matmul %26, %35, %cst_18 {dimension_numbers = #tpu.dot_dimension_numbers<[1], [0], [0], [1], [0, 0, 1, 1], [], []>} : vector<48x64xf32>, vector<64x72xf32>, vector<48x72xf32> -> vector<48x72xf32>
    %37 = arith.addf %33, %36 : vector<48x72xf32>
    %38 = vector.shape_cast %1 : vector<72xf32> to vector<1x72xf32>
    %39 = vector.broadcast %38 : vector<1x72xf32> to vector<48x72xf32>
    %40 = arith.addf %37, %39 : vector<48x72xf32>
    %cst_19 = arith.constant 0.000000e+00 : f32
    %41 = vector.broadcast %cst_19 : f32 to vector<48x72xf32>
    %42 = arith.cmpf oge, %40, %41 : vector<48x72xf32>
    %43 = vector.shape_cast %3 : vector<72xf32> to vector<1x72xf32>
    %44 = vector.broadcast %43 : vector<1x72xf32> to vector<48x72xf32>
    %45 = arith.mulf %44, %40 : vector<48x72xf32>
    %46 = arith.select %42, %40, %45 : vector<48x72xi1>, vector<48x72xf32>
    %cst_20 = arith.constant 0.000000e+00 : f32
    %47 = vector.shape_cast %19 : vector<48x1xi1> to vector<48x1xi1>
    %48 = vector.broadcast %47 : vector<48x1xi1> to vector<48x72xi1>
    %49 = vector.broadcast %cst_20 : f32 to vector<48x72xf32>
    %50 = arith.select %48, %46, %49 : vector<48x72xi1>, vector<48x72xf32>
    %cst_21 = arith.constant 0.000000e+00 : f32
    %51 = vector.broadcast %cst_21 : f32 to vector<1x72xf32>
    %52 = vector.extract_strided_slice %50 {offsets = [0, 0], sizes = [47, 72], strides = [1, 1]} : vector<48x72xf32> to vector<47x72xf32>
    %53 = tpu.concatenate %51, %52 in 0 : vector<1x72xf32>, vector<47x72xf32> -> vector<48x72xf32>
    %54 = vector.extract_strided_slice %50 {offsets = [1, 0], sizes = [47, 72], strides = [1, 1]} : vector<48x72xf32> to vector<47x72xf32>
    %cst_22 = arith.constant 0.000000e+00 : f32
    %55 = vector.broadcast %cst_22 : f32 to vector<1x72xf32>
    %56 = tpu.concatenate %54, %55 in 0 : vector<47x72xf32>, vector<1x72xf32> -> vector<48x72xf32>
    %c0_23 = arith.constant 0 : index
    %c0_24 = arith.constant 0 : index
    %c0_25 = arith.constant 0 : index
    %57 = vector.load %arg3[%c0_23, %c0_24, %c0_25] : memref<3x72x128xf32, #tpu.memory_space<vmem>>, vector<1x72x128xf32>
    %58 = vector.shape_cast %57 : vector<1x72x128xf32> to vector<72x128xf32>
    %cst_26 = arith.constant dense<0.000000e+00> : vector<48x128xf32>
    %59 = tpu.matmul %53, %58, %cst_26 {dimension_numbers = #tpu.dot_dimension_numbers<[1], [0], [0], [1], [0, 0, 1, 1], [], []>} : vector<48x72xf32>, vector<72x128xf32>, vector<48x128xf32> -> vector<48x128xf32>
    %c1_27 = arith.constant 1 : index
    %c0_28 = arith.constant 0 : index
    %c0_29 = arith.constant 0 : index
    %60 = vector.load %arg3[%c1_27, %c0_28, %c0_29] : memref<3x72x128xf32, #tpu.memory_space<vmem>>, vector<1x72x128xf32>
    %61 = vector.shape_cast %60 : vector<1x72x128xf32> to vector<72x128xf32>
    %cst_30 = arith.constant dense<0.000000e+00> : vector<48x128xf32>
    %62 = tpu.matmul %50, %61, %cst_30 {dimension_numbers = #tpu.dot_dimension_numbers<[1], [0], [0], [1], [0, 0, 1, 1], [], []>} : vector<48x72xf32>, vector<72x128xf32>, vector<48x128xf32> -> vector<48x128xf32>
    %63 = arith.addf %59, %62 : vector<48x128xf32>
    %c2_31 = arith.constant 2 : index
    %c0_32 = arith.constant 0 : index
    %c0_33 = arith.constant 0 : index
    %64 = vector.load %arg3[%c2_31, %c0_32, %c0_33] : memref<3x72x128xf32, #tpu.memory_space<vmem>>, vector<1x72x128xf32>
    %65 = vector.shape_cast %64 : vector<1x72x128xf32> to vector<72x128xf32>
    %cst_34 = arith.constant dense<0.000000e+00> : vector<48x128xf32>
    %66 = tpu.matmul %56, %65, %cst_34 {dimension_numbers = #tpu.dot_dimension_numbers<[1], [0], [0], [1], [0, 0, 1, 1], [], []>} : vector<48x72xf32>, vector<72x128xf32>, vector<48x128xf32> -> vector<48x128xf32>
    %67 = arith.addf %63, %66 : vector<48x128xf32>
    %68 = vector.shape_cast %5 : vector<128xf32> to vector<1x128xf32>
    %69 = vector.broadcast %68 : vector<1x128xf32> to vector<48x128xf32>
    %70 = arith.addf %67, %69 : vector<48x128xf32>
    %cst_35 = arith.constant 0.000000e+00 : f32
    %71 = vector.broadcast %cst_35 : f32 to vector<48x128xf32>
    %72 = arith.cmpf oge, %70, %71 : vector<48x128xf32>
    %73 = vector.shape_cast %7 : vector<128xf32> to vector<1x128xf32>
    %74 = vector.broadcast %73 : vector<1x128xf32> to vector<48x128xf32>
    %75 = arith.mulf %74, %70 : vector<48x128xf32>
    %76 = arith.select %72, %70, %75 : vector<48x128xi1>, vector<48x128xf32>
    %c0_36 = arith.constant 0 : index
    %c0_37 = arith.constant 0 : index
    %77 = vector.load %arg5[%c0_36, %c0_37] : memref<48x128xf32, #tpu.memory_space<vmem>>, vector<48x128xf32>
    tpu.vector_store %arg5[%c0_36, %c0_37], %76 {strides = array<i32>} : memref<48x128xf32, #tpu.memory_space<vmem>>, vector<48x128xf32>,
    return
  }
  func.func @transform_0(%arg0: i32) -> (i32, i32) {
    %c0_i32 = arith.constant 0 : i32
    %c0_i32_0 = arith.constant 0 : i32
    return %arg0, %c0_i32 : i32, i32
  }
  func.func @transform_1(%arg0: i32) -> (i32, i32, i32) {
    %c0_i32 = arith.constant 0 : i32
    %c0_i32_0 = arith.constant 0 : i32
    %c0_i32_1 = arith.constant 0 : i32
    %c0_i32_2 = arith.constant 0 : i32
    return %c0_i32, %c0_i32_0, %c0_i32_1 : i32, i32, i32
  }
  func.func @transform_2(%arg0: i32) -> (i32, i32, i32) {
    %c0_i32 = arith.constant 0 : i32
    %c0_i32_0 = arith.constant 0 : i32
    %c0_i32_1 = arith.constant 0 : i32
    %c0_i32_2 = arith.constant 0 : i32
    return %c0_i32, %c0_i32_0, %c0_i32_1 : i32, i32, i32
  }
  func.func @transform_3(%arg0: i32) -> (i32, i32) {
    %c0_i32 = arith.constant 0 : i32
    %c0_i32_0 = arith.constant 0 : i32
    %c0_i32_1 = arith.constant 0 : i32
    return %c0_i32, %c0_i32_0 : i32, i32
  }
  func.func @transform_4(%arg0: i32) -> (i32, i32) {
    %c0_i32 = arith.constant 0 : i32
    %c0_i32_0 = arith.constant 0 : i32
    return %arg0, %c0_i32 : i32, i32
  }
}

</mosaic_0001>

<llo_original>
// kernel: tpu_custom_call.1
$region0: #{tpu_custom_call.1}
  #allocation0 [shape = 'u32[]', space=smem, size = 0x4, offset = 0x4, fixed_abs, tag = 'smem constant byte address 0x4 - core index']
  #allocation1 [shape = 'u32[144,128]{1,0:T(1,128)}', space=vmem, size = 0x12000, scoped, tag = 'internal scratch']
  %s0 = inlined_call_operand.hbm [shape: f32[48,64], index: 0, kind: input, shape index: {}]
  %s1 = inlined_call_operand.hbm [shape: f32[3,64,72], index: 1, kind: input, shape index: {}]
  %s2 = inlined_call_operand.hbm [shape: f32[3,72,128], index: 2, kind: input, shape index: {}]
  %s3 = inlined_call_operand.vmem [shape: f32[4,128], index: 3, kind: input, shape index: {}]
  %s4 = inlined_call_operand.hbm [shape: f32[48,128], index: 4, kind: output, shape index: {}]
  %s5 = sld [smem:[#allocation0]]
  $region38: #{tpu_custom_call.1} parent=0
    _
  %s7 = ssub.s32 1, %s5
  %s8 = scalar_select 0, %s7, %s5
  $region1: #{tpu_custom_call.1} parent=0
    #allocation2 [shape = 'u8[24576]{0}', space=vmem, size = 0x6000, scoped, tag = 'input window, operand 0, single buffered']
    #allocation3 [shape = 's32[1]{0}', space=sflag, size = 0x4, scoped, tag = 'scoped memory for tpu_custom_call.1']
    #allocation4 [shape = 's32[1]{0}', space=sflag, size = 0x4, scoped, tag = 'scoped memory for tpu_custom_call.1']
    #allocation5 [shape = 'u8[98304]{0}', space=vmem, size = 0x18000, scoped, tag = 'input window, operand 1, single buffered']
    #allocation6 [shape = 's32[1]{0}', space=sflag, size = 0x4, scoped, tag = 'scoped memory for tpu_custom_call.1']
    #allocation7 [shape = 'u8[110592]{0}', space=vmem, size = 0x1b000, scoped, tag = 'input window, operand 2, single buffered']
    #allocation8 [shape = 'u8[24576]{0}', space=vmem, size = 0x6000, scoped, tag = 'output window, operand 0, single buffered']
    %9 = vsyncpa [#allocation3], 0
    %10 = vsyncpa [#allocation6], 0
    %11 = vsyncpa [#allocation4], 0
    // Predicated region
    $region2: #{tpu_custom_call.1} parent=1 // pred_check
      _
    $region3: #{tpu_custom_call.1} parent=1 // pred_check_branch
      %13 = sbr.rel (0) target = $region5
    $region4: #{tpu_custom_call.1} parent=1 // pred_region
      %s15 = ssub.s32 768, 768
      %16 = vsyncadd [#allocation3], %s15
      %s17 = sshll.u32 [#allocation2], 4
      %s18 = int_to_ptr.vmem [resolvable:$true] %s17
      %23 = dma.hbm_to_vmem [thread:$0]  %s0, 768, %s18, [#allocation3], 128, 128, 8
    $region5: #{tpu_custom_call.1} parent=1 // pred_fallthru
      _
    // Predicated region
    $region6: #{tpu_custom_call.1} parent=1 // pred_check
      _
    $region7: #{tpu_custom_call.1} parent=1 // pred_check_branch
      %25 = sbr.rel (0) target = $region9
    $region8: #{tpu_custom_call.1} parent=1 // pred_region
      %s27 = ssub.s32 3072, 3072
      %28 = vsyncadd [#allocation6], %s27
      %s29 = sshll.u32 [#allocation5], 4
      %s30 = int_to_ptr.vmem [resolvable:$true] %s29
      %35 = dma.hbm_to_vmem [thread:$0]  %s1, 3072, %s30, [#allocation6], 128, 128, 8
    $region9: #{tpu_custom_call.1} parent=1 // pred_fallthru
      _
    // Predicated region
    $region10: #{tpu_custom_call.1} parent=1 // pred_check
      _
    $region11: #{tpu_custom_call.1} parent=1 // pred_check_branch
      %37 = sbr.rel (0) target = $region13
    $region12: #{tpu_custom_call.1} parent=1 // pred_region
      %s39 = ssub.s32 3456, 3456
      %40 = vsyncadd [#allocation6], %s39
      %s41 = sshll.u32 [#allocation7], 4
      %s42 = int_to_ptr.vmem [resolvable:$true] %s41
      %47 = dma.hbm_to_vmem [thread:$0]  %s2, 3456, %s42, [#allocation6], 128, 128, 8
    $region13: #{tpu_custom_call.1} parent=1 // pred_fallthru
      _
    // Predicated region
    $region14: #{tpu_custom_call.1} parent=1 // pred_check
      _
    $region15: #{tpu_custom_call.1} parent=1 // pred_check_branch
      %49 = sbr.rel (0) target = $region17
    $region16: #{tpu_custom_call.1} parent=1 // pred_region
      _
    $region17: #{tpu_custom_call.1} parent=1 // pred_fallthru
      _
    // Predicated region
    $region18: #{tpu_custom_call.1} parent=1 // pred_check
      _
    $region19: #{tpu_custom_call.1} parent=1 // pred_check_branch
      %51 = sbr.rel (0) target = $region21
    $region20: #{tpu_custom_call.1} parent=1 // pred_region
      %52 = dma.done [#allocation3], 768
    $region21: #{tpu_custom_call.1} parent=1 // pred_fallthru
      _
    // Predicated region
    $region22: #{tpu_custom_call.1} parent=1 // pred_check
      _
    $region23: #{tpu_custom_call.1} parent=1 // pred_check_branch
      %54 = sbr.rel (0) target = $region25
    $region24: #{tpu_custom_call.1} parent=1 // pred_region
      %55 = dma.done [#allocation6], 3072
    $region25: #{tpu_custom_call.1} parent=1 // pred_fallthru
      _
    // Predicated region
    $region26: #{tpu_custom_call.1} parent=1 // pred_check
      _
    $region27: #{tpu_custom_call.1} parent=1 // pred_check_branch
      %57 = sbr.rel (0) target = $region29
    $region28: #{tpu_custom_call.1} parent=1 // pred_region
      %58 = dma.done [#allocation6], 3456
    $region29: #{tpu_custom_call.1} parent=1 // pred_fallthru
      _
    %v59 = vld [vmem:[%s3] sm:$0x1]
    %v60 = vld [vmem:[%s3 + $0x1] sm:$0x1]
    %v61 = vld [vmem:[%s3 + $0x2] sm:$0x1]
    %v62 = vld [vmem:[%s3 + $0x3] sm:$0x1]
    %v63 = vlaneseq
    %v64 = vshrl.u32 %v63, 7
    %v65 = vadd.s32 %v64, 8
    %v66 = vadd.s32 %v64, 16
    %v67 = vadd.s32 %v64, 24
    %v68 = vadd.s32 %v64, 32
    %v69 = vadd.s32 %v64, 40
    %vm70 = vcmp.ge.s32.totalorder %v64, 1
    %vm71 = vcmp.ge.s32.totalorder %v65, 1
    %vm72 = vcmp.ge.s32.totalorder %v66, 1
    %vm73 = vcmp.ge.s32.totalorder %v67, 1
    %vm74 = vcmp.ge.s32.totalorder %v68, 1
    %vm75 = vcmp.ge.s32.totalorder %v69, 1
    %vm76 = vcmp.le.s32.totalorder %v64, 16
    %vm77 = vcmp.le.s32.totalorder %v65, 16
    %vm78 = vcmp.le.s32.totalorder %v66, 16
    %vm79 = vcmp.le.s32.totalorder %v67, 16
    %vm80 = vcmp.le.s32.totalorder %v68, 16
    %vm81 = vcmp.le.s32.totalorder %v69, 16
    %vm82 = vmand %vm70, %vm76
    %vm83 = vmand %vm71, %vm77
    %vm84 = vmand %vm72, %vm78
    %vm85 = vmand %vm73, %vm79
    %vm86 = vmand %vm74, %vm80
    %vm87 = vmand %vm75, %vm81
    %vm88 = vcmp.ge.s32.totalorder %v64, 25
    %vm89 = vcmp.ge.s32.totalorder %v65, 25
    %vm90 = vcmp.ge.s32.totalorder %v66, 25
    %vm91 = vcmp.ge.s32.totalorder %v67, 25
    %vm92 = vcmp.ge.s32.totalorder %v68, 25
    %vm93 = vcmp.ge.s32.totalorder %v69, 25
    %vm94 = vcmp.le.s32.totalorder %v64, 40
    %vm95 = vcmp.le.s32.totalorder %v65, 40
    %vm96 = vcmp.le.s32.totalorder %v66, 40
    %vm97 = vcmp.le.s32.totalorder %v67, 40
    %vm98 = vcmp.le.s32.totalorder %v68, 40
    %vm99 = vcmp.le.s32.totalorder %v69, 40
    %vm100 = vmand %vm88, %vm94
    %vm101 = vmand %vm89, %vm95
    %vm102 = vmand %vm90, %vm96
    %vm103 = vmand %vm91, %vm97
    %vm104 = vmand %vm92, %vm98
    %vm105 = vmand %vm93, %vm99
    %vm106 = vmor %vm82, %vm100
    %vm107 = vmor %vm83, %vm101
    %vm108 = vmor %vm84, %vm102
    %vm109 = vmor %vm85, %vm103
    %vm110 = vmor %vm86, %vm104
    %vm111 = vmor %vm87, %vm105
    %v112 = vld [vmem:[#allocation2] sm:$0xff]
    %v113 = vld [vmem:[#allocation2 + $0x8] sm:$0xff]
    %v114 = vld [vmem:[#allocation2 + $0x10] sm:$0xff]
    %v115 = vld [vmem:[#allocation2 + $0x18] sm:$0xff]
    %v116 = vld [vmem:[#allocation2 + $0x20] sm:$0xff]
    %v117 = vld [vmem:[#allocation2 + $0x28] sm:$0xff]
    %vm124 = vcmask 1040384
    %v125 = vrot.slane %v112, 7
    %v126 = vrot.slane %v113, 7
    %v127 = vsel %vm124, %v125, %v126
    %v128 = vrot.slane %v114, 7
    %v129 = vsel %vm124, %v126, %v128
    %v130 = vrot.slane %v115, 7
    %v131 = vsel %vm124, %v128, %v130
    %v132 = vrot.slane %v116, 7
    %v133 = vsel %vm124, %v130, %v132
    %v134 = vrot.slane %v117, 7
    %v135 = vsel %vm124, %v132, %v134
    %v137 = vsel %vm124, 0.0, %v125
    %vm138 = vcmask 1046528
    %v139 = vrot.slane %v112, 1
    %v140 = vrot.slane %v113, 1
    %v141 = vsel %vm138, %v139, %v140
    %v142 = vrot.slane %v114, 1
    %v143 = vsel %vm138, %v140, %v142
    %v144 = vrot.slane %v115, 1
    %v145 = vsel %vm138, %v142, %v144
    %v146 = vrot.slane %v116, 1
    %v147 = vsel %vm138, %v144, %v146
    %v148 = vrot.slane %v117, 1
    %v149 = vsel %vm138, %v146, %v148
    %v151 = vsel %vm138, %v148, 0.0
    %v152 = vld [vmem:[#allocation5] sm:$0xff]
    %v153 = vld [vmem:[#allocation5 + $0x8] sm:$0xff]
    %v154 = vld [vmem:[#allocation5 + $0x10] sm:$0xff]
    %v155 = vld [vmem:[#allocation5 + $0x18] sm:$0xff]
    %v156 = vld [vmem:[#allocation5 + $0x20] sm:$0xff]
    %v157 = vld [vmem:[#allocation5 + $0x28] sm:$0xff]
    %v158 = vld [vmem:[#allocation5 + $0x30] sm:$0xff]
    %v159 = vld [vmem:[#allocation5 + $0x38] sm:$0xff]
    %s160 = scalar_lea.vmem [#allocation5], 64
    %v161 = vld [vmem:[%s160] sm:$0xff]
    %v162 = vld [vmem:[%s160 + $0x8] sm:$0xff]
    %v163 = vld [vmem:[%s160 + $0x10] sm:$0xff]
    %v164 = vld [vmem:[%s160 + $0x18] sm:$0xff]
    %v165 = vld [vmem:[%s160 + $0x20] sm:$0xff]
    %v166 = vld [vmem:[%s160 + $0x28] sm:$0xff]
    %v167 = vld [vmem:[%s160 + $0x30] sm:$0xff]
    %v168 = vld [vmem:[%s160 + $0x38] sm:$0xff]
    %vm169 = vcmask 523264
    %v170 = vsel %vm169, %v112, 0
    %v172 = vsel %vm169, %v113, 0
    %v174 = vsel %vm169, %v114, 0
    %v176 = vsel %vm169, %v115, 0
    %v178 = vsel %vm169, %v116, 0
    %v180 = vsel %vm169, %v117, 0
    %182 = vmatprep.subr.mxu0 0.0
    %183 = vmatpush1.msra.mxu0 0.0
    %184 = vmatprep.subr.mxu0 0.0
    %185 = vmatpush1.msra.mxu0 0.0
    %186 = vmatprep.subr.mxu0 0.0
    %187 = vmatpush1.msra.mxu0 0.0
    %188 = vmatprep.subr.mxu0 0.0
    %189 = vmatpush1.msra.mxu0 0.0
    %190 = vmatprep.subr.mxu0 0.0
    %191 = vmatpush1.msra.mxu0 0.0
    %192 = vmatprep.subr.mxu0 0.0
    %193 = vmatpush1.msra.mxu0 0.0
    %194 = vmatprep.subr.mxu0 0.0
    %195 = vmatpush1.msra.mxu0 0.0
    %196 = vmatprep.subr.mxu0 0.0
    %197 = vmatpush1.msra.mxu0 0.0
    %198 = vmatprep.subr.mxu0 0.0
    %199 = vmatpush1.msra.mxu0 %v168
    %200 = vmatprep.subr.mxu0 0.0
    %201 = vmatpush1.msra.mxu0 %v167
    %202 = vmatprep.subr.mxu0 0.0
    %203 = vmatpush1.msra.mxu0 %v166
    %204 = vmatprep.subr.mxu0 0.0
    %205 = vmatpush1.msra.mxu0 %v165
    %206 = vmatprep.subr.mxu0 0.0
    %207 = vmatpush1.msra.mxu0 %v164
    %208 = vmatprep.subr.mxu0 0.0
    %209 = vmatpush1.msra.mxu0 %v163
    %210 = vmatprep.subr.mxu0 0.0
    %211 = vmatpush1.msra.mxu0 %v162
    %212 = vmatprep.subr.mxu0 0.0
    %213 = vmatpush1.msra.mxu0 %v161
    %214 = vmatprep.subr.mxu0 0.0
    %215 = vmatpush2.msra.mxu0 0.0
    %216 = vmatprep.subr.mxu0 0.0
    %217 = vmatpush2.msra.mxu0 0.0
    %218 = vmatprep.subr.mxu0 0.0
    %219 = vmatpush2.msra.mxu0 0.0
    %220 = vmatprep.subr.mxu0 0.0
    %221 = vmatpush2.msra.mxu0 0.0
    %222 = vmatprep.subr.mxu0 0.0
    %223 = vmatpush2.msra.mxu0 0.0
    %224 = vmatprep.subr.mxu0 0.0
    %225 = vmatpush2.msra.mxu0 0.0
    %226 = vmatprep.subr.mxu0 0.0
    %227 = vmatpush2.msra.mxu0 0.0
    %228 = vmatprep.subr.mxu0 0.0
    %229 = vmatpush2.msra.mxu0 0.0
    %230 = vmatprep.subr.mxu0 0.0
    %231 = vmatpush2.msra.mxu0 0.0
    %232 = vmatprep.subr.mxu0 0.0
    %233 = vmatpush2.msra.mxu0 0.0
    %234 = vmatprep.subr.mxu0 0.0
    %235 = vmatpush2.msra.mxu0 0.0
    %236 = vmatprep.subr.mxu0 0.0
    %237 = vmatpush2.msra.mxu0 0.0
    %238 = vmatprep.subr.mxu0 0.0
    %239 = vmatpush2.msra.mxu0 0.0
    %240 = vmatprep.subr.mxu0 0.0
    %241 = vmatpush2.msra.mxu0 0.0
    %242 = vmatprep.subr.mxu0 0.0
    %243 = vmatpush2.msra.mxu0 0.0
    %244 = vmatprep.subr.mxu0 0.0
    %245 = vmatpush2.msra.mxu0 0.0
    %246 = vmatprep.mubr.f32.mxu0 0.0
    %247 = vmatmul.mubr.f32.gmra.mxu0 %v170
    %v248 = vpop.f32.mrf.mxu0
    %v249 = vadd.f32 0.0, %v248
    %v250 = vpop.f32.mrf.mxu0
    %251 = vmatprep.mubr.f32.mxu0 0.0
    %252 = vmatmul.mubr.f32.gmra.mxu0 %v172
    %v253 = vpop.f32.mrf.mxu0
    %v254 = vadd.f32 0.0, %v253
    %v255 = vpop.f32.mrf.mxu0
    %256 = vmatprep.mubr.f32.mxu0 0.0
    %257 = vmatmul.mubr.f32.gmra.mxu0 %v174
    %v258 = vpop.f32.mrf.mxu0
    %v259 = vadd.f32 0.0, %v258
    %v260 = vpop.f32.mrf.mxu0
    %261 = vmatprep.mubr.f32.mxu0 0.0
    %262 = vmatmul.mubr.f32.gmra.mxu0 %v176
    %v263 = vpop.f32.mrf.mxu0
    %v264 = vadd.f32 0.0, %v263
    %v265 = vpop.f32.mrf.mxu0
    %266 = vmatprep.mubr.f32.mxu0 0.0
    %267 = vmatmul.mubr.f32.gmra.mxu0 %v178
    %v268 = vpop.f32.mrf.mxu0
    %v269 = vadd.f32 0.0, %v268
    %v270 = vpop.f32.mrf.mxu0
    %271 = vmatprep.mubr.f32.mxu0 0.0
    %272 = vmatmul.mubr.f32.gmra.mxu0 %v180
    %v273 = vpop.f32.mrf.mxu0
    %v274 = vadd.f32 0.0, %v273
    %v275 = vpop.f32.mrf.mxu0
    %276 = vdwg.mxu0
    %v278 = vsel %vm169, %v137, 0
    %v280 = vsel %vm169, %v127, 0
    %v282 = vsel %vm169, %v129, 0
    %v284 = vsel %vm169, %v131, 0
    %v286 = vsel %vm169, %v133, 0
    %v288 = vsel %vm169, %v135, 0
    %290 = vmatprep.subr.mxu0 0.0
    %291 = vmatpush1.msra.mxu0 0.0
    %292 = vmatprep.subr.mxu0 0.0
    %293 = vmatpush1.msra.mxu0 0.0
    %294 = vmatprep.subr.mxu0 0.0
    %295 = vmatpush1.msra.mxu0 0.0
    %296 = vmatprep.subr.mxu0 0.0
    %297 = vmatpush1.msra.mxu0 0.0
    %298 = vmatprep.subr.mxu0 0.0
    %299 = vmatpush1.msra.mxu0 0.0
    %300 = vmatprep.subr.mxu0 0.0
    %301 = vmatpush1.msra.mxu0 0.0
    %302 = vmatprep.subr.mxu0 0.0
    %303 = vmatpush1.msra.mxu0 0.0
    %304 = vmatprep.subr.mxu0 0.0
    %305 = vmatpush1.msra.mxu0 0.0
    %306 = vmatprep.subr.mxu0 0.0
    %307 = vmatpush1.msra.mxu0 %v159
    %308 = vmatprep.subr.mxu0 0.0
    %309 = vmatpush1.msra.mxu0 %v158
    %310 = vmatprep.subr.mxu0 0.0
    %311 = vmatpush1.msra.mxu0 %v157
    %312 = vmatprep.subr.mxu0 0.0
    %313 = vmatpush1.msra.mxu0 %v156
    %314 = vmatprep.subr.mxu0 0.0
    %315 = vmatpush1.msra.mxu0 %v155
    %316 = vmatprep.subr.mxu0 0.0
    %317 = vmatpush1.msra.mxu0 %v154
    %318 = vmatprep.subr.mxu0 0.0
    %319 = vmatpush1.msra.mxu0 %v153
    %320 = vmatprep.subr.mxu0 0.0
    %321 = vmatpush1.msra.mxu0 %v152
    %322 = vmatprep.subr.mxu0 0.0
    %323 = vmatpush2.msra.mxu0 0.0
    %324 = vmatprep.subr.mxu0 0.0
    %325 = vmatpush2.msra.mxu0 0.0
    %326 = vmatprep.subr.mxu0 0.0
    %327 = vmatpush2.msra.mxu0 0.0
    %328 = vmatprep.subr.mxu0 0.0
    %329 = vmatpush2.msra.mxu0 0.0
    %330 = vmatprep.subr.mxu0 0.0
    %331 = vmatpush2.msra.mxu0 0.0
    %332 = vmatprep.subr.mxu0 0.0
    %333 = vmatpush2.msra.mxu0 0.0
    %334 = vmatprep.subr.mxu0 0.0
    %335 = vmatpush2.msra.mxu0 0.0
    %336 = vmatprep.subr.mxu0 0.0
    %337 = vmatpush2.msra.mxu0 0.0
    %338 = vmatprep.subr.mxu0 0.0
    %339 = vmatpush2.msra.mxu0 0.0
    %340 = vmatprep.subr.mxu0 0.0
    %341 = vmatpush2.msra.mxu0 0.0
    %342 = vmatprep.subr.mxu0 0.0
    %343 = vmatpush2.msra.mxu0 0.0
    %344 = vmatprep.subr.mxu0 0.0
    %345 = vmatpush2.msra.mxu0 0.0
    %346 = vmatprep.subr.mxu0 0.0
    %347 = vmatpush2.msra.mxu0 0.0
    %348 = vmatprep.subr.mxu0 0.0
    %349 = vmatpush2.msra.mxu0 0.0
    %350 = vmatprep.subr.mxu0 0.0
    %351 = vmatpush2.msra.mxu0 0.0
    %352 = vmatprep.subr.mxu0 0.0
    %353 = vmatpush2.msra.mxu0 0.0
    %354 = vmatprep.mubr.f32.mxu0 0.0
    %355 = vmatmul.mubr.f32.gmra.mxu0 %v278
    %v356 = vpop.f32.mrf.mxu0
    %v357 = vadd.f32 %v249, %v356
    %v358 = vpop.f32.mrf.mxu0
    %359 = vmatprep.mubr.f32.mxu0 0.0
    %360 = vmatmul.mubr.f32.gmra.mxu0 %v280
    %v361 = vpop.f32.mrf.mxu0
    %v362 = vadd.f32 %v254, %v361
    %v363 = vpop.f32.mrf.mxu0
    %364 = vmatprep.mubr.f32.mxu0 0.0
    %365 = vmatmul.mubr.f32.gmra.mxu0 %v282
    %v366 = vpop.f32.mrf.mxu0
    %v367 = vadd.f32 %v259, %v366
    %v368 = vpop.f32.mrf.mxu0
    %369 = vmatprep.mubr.f32.mxu0 0.0
    %370 = vmatmul.mubr.f32.gmra.mxu0 %v284
    %v371 = vpop.f32.mrf.mxu0
    %v372 = vadd.f32 %v264, %v371
    %v373 = vpop.f32.mrf.mxu0
    %374 = vmatprep.mubr.f32.mxu0 0.0
    %375 = vmatmul.mubr.f32.gmra.mxu0 %v286
    %v376 = vpop.f32.mrf.mxu0
    %v377 = vadd.f32 %v269, %v376
    %v378 = vpop.f32.mrf.mxu0
    %379 = vmatprep.mubr.f32.mxu0 0.0
    %380 = vmatmul.mubr.f32.gmra.mxu0 %v288
    %v381 = vpop.f32.mrf.mxu0
    %v382 = vadd.f32 %v274, %v381
    %v383 = vpop.f32.mrf.mxu0
    %384 = vdwg.mxu0
    %s385 = scalar_lea.vmem [#allocation5], 128
    %v386 = vld [vmem:[%s385] sm:$0xff]
    %v387 = vld [vmem:[%s385 + $0x8] sm:$0xff]
    %v388 = vld [vmem:[%s385 + $0x10] sm:$0xff]
    %v389 = vld [vmem:[%s385 + $0x18] sm:$0xff]
    %v390 = vld [vmem:[%s385 + $0x20] sm:$0xff]
    %v391 = vld [vmem:[%s385 + $0x28] sm:$0xff]
    %v392 = vld [vmem:[%s385 + $0x30] sm:$0xff]
    %v393 = vld [vmem:[%s385 + $0x38] sm:$0xff]
    %v394 = vsel %vm169, %v141, 0
    %v396 = vsel %vm169, %v143, 0
    %v398 = vsel %vm169, %v145, 0
    %v400 = vsel %vm169, %v147, 0
    %v402 = vsel %vm169, %v149, 0
    %v405 = vsel %vm169, %v151, 0
    %407 = vmatprep.subr.mxu0 0.0
    %408 = vmatpush1.msra.mxu0 0.0
    %409 = vmatprep.subr.mxu0 0.0
    %410 = vmatpush1.msra.mxu0 0.0
    %411 = vmatprep.subr.mxu0 0.0
    %412 = vmatpush1.msra.mxu0 0.0
    %413 = vmatprep.subr.mxu0 0.0
    %414 = vmatpush1.msra.mxu0 0.0
    %415 = vmatprep.subr.mxu0 0.0
    %416 = vmatpush1.msra.mxu0 0.0
    %417 = vmatprep.subr.mxu0 0.0
    %418 = vmatpush1.msra.mxu0 0.0
    %419 = vmatprep.subr.mxu0 0.0
    %420 = vmatpush1.msra.mxu0 0.0
    %421 = vmatprep.subr.mxu0 0.0
    %422 = vmatpush1.msra.mxu0 0.0
    %423 = vmatprep.subr.mxu0 0.0
    %424 = vmatpush1.msra.mxu0 %v393
    %425 = vmatprep.subr.mxu0 0.0
    %426 = vmatpush1.msra.mxu0 %v392
    %427 = vmatprep.subr.mxu0 0.0
    %428 = vmatpush1.msra.mxu0 %v391
    %429 = vmatprep.subr.mxu0 0.0
    %430 = vmatpush1.msra.mxu0 %v390
    %431 = vmatprep.subr.mxu0 0.0
    %432 = vmatpush1.msra.mxu0 %v389
    %433 = vmatprep.subr.mxu0 0.0
    %434 = vmatpush1.msra.mxu0 %v388
    %435 = vmatprep.subr.mxu0 0.0
    %436 = vmatpush1.msra.mxu0 %v387
    %437 = vmatprep.subr.mxu0 0.0
    %438 = vmatpush1.msra.mxu0 %v386
    %439 = vmatprep.subr.mxu0 0.0
    %440 = vmatpush2.msra.mxu0 0.0
    %441 = vmatprep.subr.mxu0 0.0
    %442 = vmatpush2.msra.mxu0 0.0
    %443 = vmatprep.subr.mxu0 0.0
    %444 = vmatpush2.msra.mxu0 0.0
    %445 = vmatprep.subr.mxu0 0.0
    %446 = vmatpush2.msra.mxu0 0.0
    %447 = vmatprep.subr.mxu0 0.0
    %448 = vmatpush2.msra.mxu0 0.0
    %449 = vmatprep.subr.mxu0 0.0
    %450 = vmatpush2.msra.mxu0 0.0
    %451 = vmatprep.subr.mxu0 0.0
    %452 = vmatpush2.msra.mxu0 0.0
    %453 = vmatprep.subr.mxu0 0.0
    %454 = vmatpush2.msra.mxu0 0.0
    %455 = vmatprep.subr.mxu0 0.0
    %456 = vmatpush2.msra.mxu0 0.0
    %457 = vmatprep.subr.mxu0 0.0
    %458 = vmatpush2.msra.mxu0 0.0
    %459 = vmatprep.subr.mxu0 0.0
    %460 = vmatpush2.msra.mxu0 0.0
    %461 = vmatprep.subr.mxu0 0.0
    %462 = vmatpush2.msra.mxu0 0.0
    %463 = vmatprep.subr.mxu0 0.0
    %464 = vmatpush2.msra.mxu0 0.0
    %465 = vmatprep.subr.mxu0 0.0
    %466 = vmatpush2.msra.mxu0 0.0
    %467 = vmatprep.subr.mxu0 0.0
    %468 = vmatpush2.msra.mxu0 0.0
    %469 = vmatprep.subr.mxu0 0.0
    %470 = vmatpush2.msra.mxu0 0.0
    %471 = vmatprep.mubr.f32.mxu0 0.0
    %472 = vmatmul.mubr.f32.gmra.mxu0 %v394
    %v473 = vpop.f32.mrf.mxu0
    %v474 = vadd.f32 0.0, %v473
    %v475 = vpop.f32.mrf.mxu0
    %476 = vmatprep.mubr.f32.mxu0 0.0
    %477 = vmatmul.mubr.f32.gmra.mxu0 %v396
    %v478 = vpop.f32.mrf.mxu0
    %v479 = vadd.f32 0.0, %v478
    %v480 = vpop.f32.mrf.mxu0
    %481 = vmatprep.mubr.f32.mxu0 0.0
    %482 = vmatmul.mubr.f32.gmra.mxu0 %v398
    %v483 = vpop.f32.mrf.mxu0
    %v484 = vadd.f32 0.0, %v483
    %v485 = vpop.f32.mrf.mxu0
    %486 = vmatprep.mubr.f32.mxu0 0.0
    %487 = vmatmul.mubr.f32.gmra.mxu0 %v400
    %v488 = vpop.f32.mrf.mxu0
    %v489 = vadd.f32 0.0, %v488
    %v490 = vpop.f32.mrf.mxu0
    %491 = vmatprep.mubr.f32.mxu0 0.0
    %492 = vmatmul.mubr.f32.gmra.mxu0 %v402
    %v493 = vpop.f32.mrf.mxu0
    %v494 = vadd.f32 0.0, %v493
    %v495 = vpop.f32.mrf.mxu0
    %496 = vmatprep.mubr.f32.mxu0 0.0
    %497 = vmatmul.mubr.f32.gmra.mxu0 %v405
    %v498 = vpop.f32.mrf.mxu0
    %v499 = vadd.f32 0.0, %v498
    %v500 = vpop.f32.mrf.mxu0
    %501 = vdwg.mxu0
    %v502 = vadd.f32 %v357, %v474
    %v503 = vadd.f32 %v362, %v479
    %v504 = vadd.f32 %v367, %v484
    %v505 = vadd.f32 %v372, %v489
    %v506 = vadd.f32 %v377, %v494
    %v507 = vadd.f32 %v382, %v499
    %v508 = vlaneseq
    %v509 = vshrl.u32 %v508, 7
    %v510 = vsub.s32 0, %v509
    %v511 = vrot.slane %v59, %v510
    %v512 = vadd.f32 %v502, %v511
    %v513 = vadd.f32 %v503, %v511
    %v514 = vadd.f32 %v504, %v511
    %v515 = vadd.f32 %v505, %v511
    %v516 = vadd.f32 %v506, %v511
    %v517 = vadd.f32 %v507, %v511
    %vm518 = vcmp.ge.f32.partialorder %v512, 0.0
    %vm519 = vcmp.ge.f32.partialorder %v513, 0.0
    %vm520 = vcmp.ge.f32.partialorder %v514, 0.0
    %vm521 = vcmp.ge.f32.partialorder %v515, 0.0
    %vm522 = vcmp.ge.f32.partialorder %v516, 0.0
    %vm523 = vcmp.ge.f32.partialorder %v517, 0.0
    %v524 = vlaneseq
    %v525 = vshrl.u32 %v524, 7
    %v526 = vsub.s32 0, %v525
    %v527 = vrot.slane %v60, %v526
    %v528 = vmul.f32 %v527, %v512
    %v529 = vmul.f32 %v527, %v513
    %v530 = vmul.f32 %v527, %v514
    %v531 = vmul.f32 %v527, %v515
    %v532 = vmul.f32 %v527, %v516
    %v533 = vmul.f32 %v527, %v517
    %v534 = vsel %vm518, %v512, %v528
    %v535 = vsel %vm519, %v513, %v529
    %v536 = vsel %vm520, %v514, %v530
    %v537 = vsel %vm521, %v515, %v531
    %v538 = vsel %vm522, %v516, %v532
    %v539 = vsel %vm523, %v517, %v533
    %v540 = vsel %vm106, 1, 0
    %v541 = vsel %vm107, 1, 0
    %v542 = vsel %vm108, 1, 0
    %v543 = vsel %vm109, 1, 0
    %v544 = vsel %vm110, 1, 0
    %v545 = vsel %vm111, 1, 0
    %vm546 = vcmp.eq.s32.totalorder %v540, 1
    %vm547 = vcmp.eq.s32.totalorder %v541, 1
    %vm548 = vcmp.eq.s32.totalorder %v542, 1
    %vm549 = vcmp.eq.s32.totalorder %v543, 1
    %vm550 = vcmp.eq.s32.totalorder %v544, 1
    %vm551 = vcmp.eq.s32.totalorder %v545, 1
    %v552 = vsel %vm546, %v534, 0.0
    %v553 = vsel %vm547, %v535, 0.0
    %v554 = vsel %vm548, %v536, 0.0
    %v555 = vsel %vm549, %v537, 0.0
    %v556 = vsel %vm550, %v538, 0.0
    %v557 = vsel %vm551, %v539, 0.0
    %v564 = vrot.slane %v552, 7
    %v565 = vrot.slane %v553, 7
    %v566 = vsel %vm124, %v564, %v565
    %v567 = vrot.slane %v554, 7
    %v568 = vsel %vm124, %v565, %v567
    %v569 = vrot.slane %v555, 7
    %v570 = vsel %vm124, %v567, %v569
    %v571 = vrot.slane %v556, 7
    %v572 = vsel %vm124, %v569, %v571
    %v573 = vrot.slane %v557, 7
    %v574 = vsel %vm124, %v571, %v573
    %v576 = vsel %vm124, 0.0, %v564
    %v577 = vrot.slane %v552, 1
    %v578 = vrot.slane %v553, 1
    %v579 = vsel %vm138, %v577, %v578
    %v580 = vrot.slane %v554, 1
    %v581 = vsel %vm138, %v578, %v580
    %v582 = vrot.slane %v555, 1
    %v583 = vsel %vm138, %v580, %v582
    %v584 = vrot.slane %v556, 1
    %v585 = vsel %vm138, %v582, %v584
    %v586 = vrot.slane %v557, 1
    %v587 = vsel %vm138, %v584, %v586
    %v589 = vsel %vm138, %v586, 0.0
    %v590 = vld [vmem:[#allocation7] sm:$0xff]
    %v591 = vld [vmem:[#allocation7 + $0x8] sm:$0xff]
    %v592 = vld [vmem:[#allocation7 + $0x10] sm:$0xff]
    %v593 = vld [vmem:[#allocation7 + $0x18] sm:$0xff]
    %v594 = vld [vmem:[#allocation7 + $0x20] sm:$0xff]
    %v595 = vld [vmem:[#allocation7 + $0x28] sm:$0xff]
    %v596 = vld [vmem:[#allocation7 + $0x30] sm:$0xff]
    %v597 = vld [vmem:[#allocation7 + $0x38] sm:$0xff]
    %v598 = vld [vmem:[#allocation7 + $0x40] sm:$0xff]
    %s599 = scalar_lea.vmem [#allocation7], 72
    %v600 = vld [vmem:[%s599] sm:$0xff]
    %v601 = vld [vmem:[%s599 + $0x8] sm:$0xff]
    %v602 = vld [vmem:[%s599 + $0x10] sm:$0xff]
    %v603 = vld [vmem:[%s599 + $0x18] sm:$0xff]
    %v604 = vld [vmem:[%s599 + $0x20] sm:$0xff]
    %v605 = vld [vmem:[%s599 + $0x28] sm:$0xff]
    %v606 = vld [vmem:[%s599 + $0x30] sm:$0xff]
    %v607 = vld [vmem:[%s599 + $0x38] sm:$0xff]
    %v608 = vld [vmem:[%s599 + $0x40] sm:$0xff]
    %vm609 = vcmask 588800
    %v610 = vsel %vm609, %v552, 0
    %v612 = vsel %vm609, %v553, 0
    %v614 = vsel %vm609, %v554, 0
    %v616 = vsel %vm609, %v555, 0
    %v618 = vsel %vm609, %v556, 0
    %v620 = vsel %vm609, %v557, 0
    %622 = vmatprep.subr.mxu0 0.0
    %623 = vmatpush1.msra.mxu0 0.0
    %624 = vmatprep.subr.mxu0 0.0
    %625 = vmatpush1.msra.mxu0 0.0
    %626 = vmatprep.subr.mxu0 0.0
    %627 = vmatpush1.msra.mxu0 0.0
    %628 = vmatprep.subr.mxu0 0.0
    %629 = vmatpush1.msra.mxu0 0.0
    %630 = vmatprep.subr.mxu0 0.0
    %631 = vmatpush1.msra.mxu0 0.0
    %632 = vmatprep.subr.mxu0 0.0
    %633 = vmatpush1.msra.mxu0 0.0
    %634 = vmatprep.subr.mxu0 0.0
    %635 = vmatpush1.msra.mxu0 0.0
    %636 = vmatprep.subr.mxu0 0.0
    %637 = vmatpush1.msra.mxu0 %v608
    %638 = vmatprep.subr.mxu0 0.0
    %639 = vmatpush1.msra.mxu0 %v607
    %640 = vmatprep.subr.mxu0 0.0
    %641 = vmatpush1.msra.mxu0 %v606
    %642 = vmatprep.subr.mxu0 0.0
    %643 = vmatpush1.msra.mxu0 %v605
    %644 = vmatprep.subr.mxu0 0.0
    %645 = vmatpush1.msra.mxu0 %v604
    %646 = vmatprep.subr.mxu0 0.0
    %647 = vmatpush1.msra.mxu0 %v603
    %648 = vmatprep.subr.mxu0 0.0
    %649 = vmatpush1.msra.mxu0 %v602
    %650 = vmatprep.subr.mxu0 0.0
    %651 = vmatpush1.msra.mxu0 %v601
    %652 = vmatprep.subr.mxu0 0.0
    %653 = vmatpush1.msra.mxu0 %v600
    %654 = vmatprep.subr.mxu0 0.0
    %655 = vmatpush2.msra.mxu0 0.0
    %656 = vmatprep.subr.mxu0 0.0
    %657 = vmatpush2.msra.mxu0 0.0
    %658 = vmatprep.subr.mxu0 0.0
    %659 = vmatpush2.msra.mxu0 0.0
    %660 = vmatprep.subr.mxu0 0.0
    %661 = vmatpush2.msra.mxu0 0.0
    %662 = vmatprep.subr.mxu0 0.0
    %663 = vmatpush2.msra.mxu0 0.0
    %664 = vmatprep.subr.mxu0 0.0
    %665 = vmatpush2.msra.mxu0 0.0
    %666 = vmatprep.subr.mxu0 0.0
    %667 = vmatpush2.msra.mxu0 0.0
    %668 = vmatprep.subr.mxu0 0.0
    %669 = vmatpush2.msra.mxu0 0.0
    %670 = vmatprep.subr.mxu0 0.0
    %671 = vmatpush2.msra.mxu0 0.0
    %672 = vmatprep.subr.mxu0 0.0
    %673 = vmatpush2.msra.mxu0 0.0
    %674 = vmatprep.subr.mxu0 0.0
    %675 = vmatpush2.msra.mxu0 0.0
    %676 = vmatprep.subr.mxu0 0.0
    %677 = vmatpush2.msra.mxu0 0.0
    %678 = vmatprep.subr.mxu0 0.0
    %679 = vmatpush2.msra.mxu0 0.0
    %680 = vmatprep.subr.mxu0 0.0
    %681 = vmatpush2.msra.mxu0 0.0
    %682 = vmatprep.subr.mxu0 0.0
    %683 = vmatpush2.msra.mxu0 0.0
    %684 = vmatprep.subr.mxu0 0.0
    %685 = vmatpush2.msra.mxu0 0.0
    %686 = vmatprep.mubr.f32.mxu0 0.0
    %687 = vmatmul.mubr.f32.gmra.mxu0 %v610
    %v688 = vpop.f32.mrf.mxu0
    %v689 = vadd.f32 0.0, %v688
    %v690 = vpop.f32.mrf.mxu0
    %691 = vmatprep.mubr.f32.mxu0 0.0
    %692 = vmatmul.mubr.f32.gmra.mxu0 %v612
    %v693 = vpop.f32.mrf.mxu0
    %v694 = vadd.f32 0.0, %v693
    %v695 = vpop.f32.mrf.mxu0
    %696 = vmatprep.mubr.f32.mxu0 0.0
    %697 = vmatmul.mubr.f32.gmra.mxu0 %v614
    %v698 = vpop.f32.mrf.mxu0
    %v699 = vadd.f32 0.0, %v698
    %v700 = vpop.f32.mrf.mxu0
    %701 = vmatprep.mubr.f32.mxu0 0.0
    %702 = vmatmul.mubr.f32.gmra.mxu0 %v616
    %v703 = vpop.f32.mrf.mxu0
    %v704 = vadd.f32 0.0, %v703
    %v705 = vpop.f32.mrf.mxu0
    %706 = vmatprep.mubr.f32.mxu0 0.0
    %707 = vmatmul.mubr.f32.gmra.mxu0 %v618
    %v708 = vpop.f32.mrf.mxu0
    %v709 = vadd.f32 0.0, %v708
    %v710 = vpop.f32.mrf.mxu0
    %711 = vmatprep.mubr.f32.mxu0 0.0
    %712 = vmatmul.mubr.f32.gmra.mxu0 %v620
    %v713 = vpop.f32.mrf.mxu0
    %v714 = vadd.f32 0.0, %v713
    %v715 = vpop.f32.mrf.mxu0
    %716 = vdwg.mxu0
    %v718 = vsel %vm609, %v576, 0
    %v720 = vsel %vm609, %v566, 0
    %v722 = vsel %vm609, %v568, 0
    %v724 = vsel %vm609, %v570, 0
    %v726 = vsel %vm609, %v572, 0
    %v728 = vsel %vm609, %v574, 0
    %730 = vmatprep.subr.mxu0 0.0
    %731 = vmatpush1.msra.mxu0 0.0
    %732 = vmatprep.subr.mxu0 0.0
    %733 = vmatpush1.msra.mxu0 0.0
    %734 = vmatprep.subr.mxu0 0.0
    %735 = vmatpush1.msra.mxu0 0.0
    %736 = vmatprep.subr.mxu0 0.0
    %737 = vmatpush1.msra.mxu0 0.0
    %738 = vmatprep.subr.mxu0 0.0
    %739 = vmatpush1.msra.mxu0 0.0
    %740 = vmatprep.subr.mxu0 0.0
    %741 = vmatpush1.msra.mxu0 0.0
    %742 = vmatprep.subr.mxu0 0.0
    %743 = vmatpush1.msra.mxu0 0.0
    %744 = vmatprep.subr.mxu0 0.0
    %745 = vmatpush1.msra.mxu0 %v598
    %746 = vmatprep.subr.mxu0 0.0
    %747 = vmatpush1.msra.mxu0 %v597
    %748 = vmatprep.subr.mxu0 0.0
    %749 = vmatpush1.msra.mxu0 %v596
    %750 = vmatprep.subr.mxu0 0.0
    %751 = vmatpush1.msra.mxu0 %v595
    %752 = vmatprep.subr.mxu0 0.0
    %753 = vmatpush1.msra.mxu0 %v594
    %754 = vmatprep.subr.mxu0 0.0
    %755 = vmatpush1.msra.mxu0 %v593
    %756 = vmatprep.subr.mxu0 0.0
    %757 = vmatpush1.msra.mxu0 %v592
    %758 = vmatprep.subr.mxu0 0.0
    %759 = vmatpush1.msra.mxu0 %v591
    %760 = vmatprep.subr.mxu0 0.0
    %761 = vmatpush1.msra.mxu0 %v590
    %762 = vmatprep.subr.mxu0 0.0
    %763 = vmatpush2.msra.mxu0 0.0
    %764 = vmatprep.subr.mxu0 0.0
    %765 = vmatpush2.msra.mxu0 0.0
    %766 = vmatprep.subr.mxu0 0.0
    %767 = vmatpush2.msra.mxu0 0.0
    %768 = vmatprep.subr.mxu0 0.0
    %769 = vmatpush2.msra.mxu0 0.0
    %770 = vmatprep.subr.mxu0 0.0
    %771 = vmatpush2.msra.mxu0 0.0
    %772 = vmatprep.subr.mxu0 0.0
    %773 = vmatpush2.msra.mxu0 0.0
    %774 = vmatprep.subr.mxu0 0.0
    %775 = vmatpush2.msra.mxu0 0.0
    %776 = vmatprep.subr.mxu0 0.0
    %777 = vmatpush2.msra.mxu0 0.0
    %778 = vmatprep.subr.mxu0 0.0
    %779 = vmatpush2.msra.mxu0 0.0
    %780 = vmatprep.subr.mxu0 0.0
    %781 = vmatpush2.msra.mxu0 0.0
    %782 = vmatprep.subr.mxu0 0.0
    %783 = vmatpush2.msra.mxu0 0.0
    %784 = vmatprep.subr.mxu0 0.0
    %785 = vmatpush2.msra.mxu0 0.0
    %786 = vmatprep.subr.mxu0 0.0
    %787 = vmatpush2.msra.mxu0 0.0
    %788 = vmatprep.subr.mxu0 0.0
    %789 = vmatpush2.msra.mxu0 0.0
    %790 = vmatprep.subr.mxu0 0.0
    %791 = vmatpush2.msra.mxu0 0.0
    %792 = vmatprep.subr.mxu0 0.0
    %793 = vmatpush2.msra.mxu0 0.0
    %794 = vmatprep.mubr.f32.mxu0 0.0
    %795 = vmatmul.mubr.f32.gmra.mxu0 %v718
    %v796 = vpop.f32.mrf.mxu0
    %v797 = vadd.f32 %v689, %v796
    %v798 = vpop.f32.mrf.mxu0
    %799 = vmatprep.mubr.f32.mxu0 0.0
    %800 = vmatmul.mubr.f32.gmra.mxu0 %v720
    %v801 = vpop.f32.mrf.mxu0
    %v802 = vadd.f32 %v694, %v801
    %v803 = vpop.f32.mrf.mxu0
    %804 = vmatprep.mubr.f32.mxu0 0.0
    %805 = vmatmul.mubr.f32.gmra.mxu0 %v722
    %v806 = vpop.f32.mrf.mxu0
    %v807 = vadd.f32 %v699, %v806
    %v808 = vpop.f32.mrf.mxu0
    %809 = vmatprep.mubr.f32.mxu0 0.0
    %810 = vmatmul.mubr.f32.gmra.mxu0 %v724
    %v811 = vpop.f32.mrf.mxu0
    %v812 = vadd.f32 %v704, %v811
    %v813 = vpop.f32.mrf.mxu0
    %814 = vmatprep.mubr.f32.mxu0 0.0
    %815 = vmatmul.mubr.f32.gmra.mxu0 %v726
    %v816 = vpop.f32.mrf.mxu0
    %v817 = vadd.f32 %v709, %v816
    %v818 = vpop.f32.mrf.mxu0
    %819 = vmatprep.mubr.f32.mxu0 0.0
    %820 = vmatmul.mubr.f32.gmra.mxu0 %v728
    %v821 = vpop.f32.mrf.mxu0
    %v822 = vadd.f32 %v714, %v821
    %v823 = vpop.f32.mrf.mxu0
    %824 = vdwg.mxu0
    %s825 = scalar_lea.vmem [#allocation7], 144
    %v826 = vld [vmem:[%s825] sm:$0xff]
    %v827 = vld [vmem:[%s825 + $0x8] sm:$0xff]
    %v828 = vld [vmem:[%s825 + $0x10] sm:$0xff]
    %v829 = vld [vmem:[%s825 + $0x18] sm:$0xff]
    %v830 = vld [vmem:[%s825 + $0x20] sm:$0xff]
    %v831 = vld [vmem:[%s825 + $0x28] sm:$0xff]
    %v832 = vld [vmem:[%s825 + $0x30] sm:$0xff]
    %v833 = vld [vmem:[%s825 + $0x38] sm:$0xff]
    %v834 = vld [vmem:[%s825 + $0x40] sm:$0xff]
    %v835 = vsel %vm609, %v579, 0
    %v837 = vsel %vm609, %v581, 0
    %v839 = vsel %vm609, %v583, 0
    %v841 = vsel %vm609, %v585, 0
    %v843 = vsel %vm609, %v587, 0
    %v846 = vsel %vm609, %v589, 0
    %848 = vmatprep.subr.mxu0 0.0
    %849 = vmatpush1.msra.mxu0 0.0
    %850 = vmatprep.subr.mxu0 0.0
    %851 = vmatpush1.msra.mxu0 0.0
    %852 = vmatprep.subr.mxu0 0.0
    %853 = vmatpush1.msra.mxu0 0.0
    %854 = vmatprep.subr.mxu0 0.0
    %855 = vmatpush1.msra.mxu0 0.0
    %856 = vmatprep.subr.mxu0 0.0
    %857 = vmatpush1.msra.mxu0 0.0
    %858 = vmatprep.subr.mxu0 0.0
    %859 = vmatpush1.msra.mxu0 0.0
    %860 = vmatprep.subr.mxu0 0.0
    %861 = vmatpush1.msra.mxu0 0.0
    %862 = vmatprep.subr.mxu0 0.0
    %863 = vmatpush1.msra.mxu0 %v834
    %864 = vmatprep.subr.mxu0 0.0
    %865 = vmatpush1.msra.mxu0 %v833
    %866 = vmatprep.subr.mxu0 0.0
    %867 = vmatpush1.msra.mxu0 %v832
    %868 = vmatprep.subr.mxu0 0.0
    %869 = vmatpush1.msra.mxu0 %v831
    %870 = vmatprep.subr.mxu0 0.0
    %871 = vmatpush1.msra.mxu0 %v830
    %872 = vmatprep.subr.mxu0 0.0
    %873 = vmatpush1.msra.mxu0 %v829
    %874 = vmatprep.subr.mxu0 0.0
    %875 = vmatpush1.msra.mxu0 %v828
    %876 = vmatprep.subr.mxu0 0.0
    %877 = vmatpush1.msra.mxu0 %v827
    %878 = vmatprep.subr.mxu0 0.0
    %879 = vmatpush1.msra.mxu0 %v826
    %880 = vmatprep.subr.mxu0 0.0
    %881 = vmatpush2.msra.mxu0 0.0
    %882 = vmatprep.subr.mxu0 0.0
    %883 = vmatpush2.msra.mxu0 0.0
    %884 = vmatprep.subr.mxu0 0.0
    %885 = vmatpush2.msra.mxu0 0.0
    %886 = vmatprep.subr.mxu0 0.0
    %887 = vmatpush2.msra.mxu0 0.0
    %888 = vmatprep.subr.mxu0 0.0
    %889 = vmatpush2.msra.mxu0 0.0
    %890 = vmatprep.subr.mxu0 0.0
    %891 = vmatpush2.msra.mxu0 0.0
    %892 = vmatprep.subr.mxu0 0.0
    %893 = vmatpush2.msra.mxu0 0.0
    %894 = vmatprep.subr.mxu0 0.0
    %895 = vmatpush2.msra.mxu0 0.0
    %896 = vmatprep.subr.mxu0 0.0
    %897 = vmatpush2.msra.mxu0 0.0
    %898 = vmatprep.subr.mxu0 0.0
    %899 = vmatpush2.msra.mxu0 0.0
    %900 = vmatprep.subr.mxu0 0.0
    %901 = vmatpush2.msra.mxu0 0.0
    %902 = vmatprep.subr.mxu0 0.0
    %903 = vmatpush2.msra.mxu0 0.0
    %904 = vmatprep.subr.mxu0 0.0
    %905 = vmatpush2.msra.mxu0 0.0
    %906 = vmatprep.subr.mxu0 0.0
    %907 = vmatpush2.msra.mxu0 0.0
    %908 = vmatprep.subr.mxu0 0.0
    %909 = vmatpush2.msra.mxu0 0.0
    %910 = vmatprep.subr.mxu0 0.0
    %911 = vmatpush2.msra.mxu0 0.0
    %912 = vmatprep.mubr.f32.mxu0 0.0
    %913 = vmatmul.mubr.f32.gmra.mxu0 %v835
    %v914 = vpop.f32.mrf.mxu0
    %v915 = vadd.f32 0.0, %v914
    %v916 = vpop.f32.mrf.mxu0
    %917 = vmatprep.mubr.f32.mxu0 0.0
    %918 = vmatmul.mubr.f32.gmra.mxu0 %v837
    %v919 = vpop.f32.mrf.mxu0
    %v920 = vadd.f32 0.0, %v919
    %v921 = vpop.f32.mrf.mxu0
    %922 = vmatprep.mubr.f32.mxu0 0.0
    %923 = vmatmul.mubr.f32.gmra.mxu0 %v839
    %v924 = vpop.f32.mrf.mxu0
    %v925 = vadd.f32 0.0, %v924
    %v926 = vpop.f32.mrf.mxu0
    %927 = vmatprep.mubr.f32.mxu0 0.0
    %928 = vmatmul.mubr.f32.gmra.mxu0 %v841
    %v929 = vpop.f32.mrf.mxu0
    %v930 = vadd.f32 0.0, %v929
    %v931 = vpop.f32.mrf.mxu0
    %932 = vmatprep.mubr.f32.mxu0 0.0
    %933 = vmatmul.mubr.f32.gmra.mxu0 %v843
    %v934 = vpop.f32.mrf.mxu0
    %v935 = vadd.f32 0.0, %v934
    %v936 = vpop.f32.mrf.mxu0
    %937 = vmatprep.mubr.f32.mxu0 0.0
    %938 = vmatmul.mubr.f32.gmra.mxu0 %v846
    %v939 = vpop.f32.mrf.mxu0
    %v940 = vadd.f32 0.0, %v939
    %v941 = vpop.f32.mrf.mxu0
    %942 = vdwg.mxu0
    %v943 = vadd.f32 %v797, %v915
    %v944 = vadd.f32 %v802, %v920
    %v945 = vadd.f32 %v807, %v925
    %v946 = vadd.f32 %v812, %v930
    %v947 = vadd.f32 %v817, %v935
    %v948 = vadd.f32 %v822, %v940
    %v949 = vlaneseq
    %v950 = vshrl.u32 %v949, 7
    %v951 = vsub.s32 0, %v950
    %v952 = vrot.slane %v61, %v951
    %v953 = vadd.f32 %v943, %v952
    %v954 = vadd.f32 %v944, %v952
    %v955 = vadd.f32 %v945, %v952
    %v956 = vadd.f32 %v946, %v952
    %v957 = vadd.f32 %v947, %v952
    %v958 = vadd.f32 %v948, %v952
    %vm959 = vcmp.ge.f32.partialorder %v953, 0.0
    %vm960 = vcmp.ge.f32.partialorder %v954, 0.0
    %vm961 = vcmp.ge.f32.partialorder %v955, 0.0
    %vm962 = vcmp.ge.f32.partialorder %v956, 0.0
    %vm963 = vcmp.ge.f32.partialorder %v957, 0.0
    %vm964 = vcmp.ge.f32.partialorder %v958, 0.0
    %v965 = vlaneseq
    %v966 = vshrl.u32 %v965, 7
    %v967 = vsub.s32 0, %v966
    %v968 = vrot.slane %v62, %v967
    %v969 = vmul.f32 %v968, %v953
    %v970 = vmul.f32 %v968, %v954
    %v971 = vmul.f32 %v968, %v955
    %v972 = vmul.f32 %v968, %v956
    %v973 = vmul.f32 %v968, %v957
    %v974 = vmul.f32 %v968, %v958
    %v975 = vsel %vm959, %v953, %v969
    %v976 = vsel %vm960, %v954, %v970
    %v977 = vsel %vm961, %v955, %v971
    %v978 = vsel %vm962, %v956, %v972
    %v979 = vsel %vm963, %v957, %v973
    %v980 = vsel %vm964, %v958, %v974
    %981 = vst [vmem:[#allocation8] sm:$0xff] %v975
    %982 = vst [vmem:[#allocation8 + $0x8] sm:$0xff] %v976
    %983 = vst [vmem:[#allocation8 + $0x10] sm:$0xff] %v977
    %984 = vst [vmem:[#allocation8 + $0x18] sm:$0xff] %v978
    %985 = vst [vmem:[#allocation8 + $0x20] sm:$0xff] %v979
    %986 = vst [vmem:[#allocation8 + $0x28] sm:$0xff] %v980
    // Predicated region
    $region30: #{tpu_custom_call.1} parent=1 // pred_check
      _
    $region31: #{tpu_custom_call.1} parent=1 // pred_check_branch
      %988 = sbr.rel (0) target = $region33
    $region32: #{tpu_custom_call.1} parent=1 // pred_region
      %s990 = ssub.s32 768, 768
      %991 = vsyncadd [#allocation4], %s990
      %s992 = sshll.u32 [#allocation8], 4
      %s993 = int_to_ptr.vmem [resolvable:$true] %s992
      %998 = dma.vmem_to_hbm [thread:$0]  %s993, 768, %s4, [#allocation4], 128, 128, 8
    $region33: #{tpu_custom_call.1} parent=1 // pred_fallthru
      _
    // Predicated region
    $region34: #{tpu_custom_call.1} parent=1 // pred_check
      _
    $region35: #{tpu_custom_call.1} parent=1 // pred_check_branch
      %1000 = sbr.rel (0) target = $region37
    $region36: #{tpu_custom_call.1} parent=1 // pred_region
      %1001 = dma.done [#allocation4], 768
    $region37: #{tpu_custom_call.1} parent=1 // pred_fallthru
      _
    %1002 = vsyncpa [#allocation3], 1
    %1003 = vsyncpa [#allocation6], 1
    %1004 = vsyncpa [#allocation4], 1

// kernel: tpu_custom_call.1
$region0: #{tpu_custom_call.1}
  #allocation0 [shape = 'u32[]', space=smem, size = 0x4, offset = 0x4, fixed_abs, tag = 'smem constant byte address 0x4 - core index']
  #allocation1 [shape = 'u32[144,128]{1,0:T(1,128)}', space=vmem, size = 0x12000, scoped, tag = 'internal scratch']
  %s0 = inlined_call_operand.hbm [shape: f32[48,64], index: 0, kind: input, shape index: {}]
  %s1 = inlined_call_operand.hbm [shape: f32[3,64,72], index: 1, kind: input, shape index: {}]
  %s2 = inlined_call_operand.hbm [shape: f32[3,72,128], index: 2, kind: input, shape index: {}]
  %s3 = inlined_call_operand.vmem [shape: f32[4,128], index: 3, kind: input, shape index: {}]
  %s4 = inlined_call_operand.hbm [shape: f32[48,128], index: 4, kind: output, shape index: {}]
  %s5 = sld [smem:[#allocation0]]
  $region38: #{tpu_custom_call.1} parent=0
    _
  %s7 = ssub.s32 1, %s5
  %s8 = scalar_select 0, %s7, %s5
  $region1: #{tpu_custom_call.1} parent=0
    #allocation2 [shape = 'u8[24576]{0}', space=vmem, size = 0x6000, scoped, tag = 'input window, operand 0, single buffered']
    #allocation3 [shape = 's32[1]{0}', space=sflag, size = 0x4, scoped, tag = 'scoped memory for tpu_custom_call.1']
    #allocation4 [shape = 's32[1]{0}', space=sflag, size = 0x4, scoped, tag = 'scoped memory for tpu_custom_call.1']
    #allocation5 [shape = 'u8[98304]{0}', space=vmem, size = 0x18000, scoped, tag = 'input window, operand 1, single buffered']
    #allocation6 [shape = 's32[1]{0}', space=sflag, size = 0x4, scoped, tag = 'scoped memory for tpu_custom_call.1']
    #allocation7 [shape = 'u8[110592]{0}', space=vmem, size = 0x1b000, scoped, tag = 'input window, operand 2, single buffered']
    #allocation8 [shape = 'u8[24576]{0}', space=vmem, size = 0x6000, scoped, tag = 'output window, operand 0, single buffered']
    %9 = vsyncpa [#allocation3], 0
    %10 = vsyncpa [#allocation6], 0
    %11 = vsyncpa [#allocation4], 0
    // Predicated region
    $region2: #{tpu_custom_call.1} parent=1 // pred_check
      _
    $region3: #{tpu_custom_call.1} parent=1 // pred_check_branch
      %13 = sbr.rel (0) target = $region5
    $region4: #{tpu_custom_call.1} parent=1 // pred_region
      %s15 = ssub.s32 768, 768
      %16 = vsyncadd [#allocation3], %s15
      %s17 = sshll.u32 [#allocation2], 4
      %s18 = int_to_ptr.vmem [resolvable:$true] %s17
      %23 = dma.hbm_to_vmem [thread:$0]  %s0, 768, %s18, [#allocation3], 128, 128, 8
    $region5: #{tpu_custom_call.1} parent=1 // pred_fallthru
      _
    // Predicated region
    $region6: #{tpu_custom_call.1} parent=1 // pred_check
      _
    $region7: #{tpu_custom_call.1} parent=1 // pred_check_branch
      %25 = sbr.rel (0) target = $region9
    $region8: #{tpu_custom_call.1} parent=1 // pred_region
      %s27 = ssub.s32 3072, 3072
      %28 = vsyncadd [#allocation6], %s27
      %s29 = sshll.u32 [#allocation5], 4
      %s30 = int_to_ptr.vmem [resolvable:$true] %s29
      %35 = dma.hbm_to_vmem [thread:$0]  %s1, 3072, %s30, [#allocation6], 128, 128, 8
    $region9: #{tpu_custom_call.1} parent=1 // pred_fallthru
      _
    // Predicated region
    $region10: #{tpu_custom_call.1} parent=1 // pred_check
      _
    $region11: #{tpu_custom_call.1} parent=1 // pred_check_branch
      %37 = sbr.rel (0) target = $region13
    $region12: #{tpu_custom_call.1} parent=1 // pred_region
      %s39 = ssub.s32 3456, 3456
      %40 = vsyncadd [#allocation6], %s39
      %s41 = sshll.u32 [#allocation7], 4
      %s42 = int_to_ptr.vmem [resolvable:$true] %s41
      %47 = dma.hbm_to_vmem [thread:$0]  %s2, 3456, %s42, [#allocation6], 128, 128, 8
    $region13: #{tpu_custom_call.1} parent=1 // pred_fallthru
      _
    // Predicated region
    $region14: #{tpu_custom_call.1} parent=1 // pred_check
      _
    $region15: #{tpu_custom_call.1} parent=1 // pred_check_branch
      %49 = sbr.rel (0) target = $region17
    $region16: #{tpu_custom_call.1} parent=1 // pred_region
      _
    $region17: #{tpu_custom_call.1} parent=1 // pred_fallthru
      _
    // Predicated region
    $region18: #{tpu_custom_call.1} parent=1 // pred_check
      _
    $region19: #{tpu_custom_call.1} parent=1 // pred_check_branch
      %51 = sbr.rel (0) target = $region21
    $region20: #{tpu_custom_call.1} parent=1 // pred_region
      %52 = dma.done [#allocation3], 768
    $region21: #{tpu_custom_call.1} parent=1 // pred_fallthru
      _
    // Predicated region
    $region22: #{tpu_custom_call.1} parent=1 // pred_check
      _
    $region23: #{tpu_custom_call.1} parent=1 // pred_check_branch
      %54 = sbr.rel (0) target = $region25
    $region24: #{tpu_custom_call.1} parent=1 // pred_region
      %55 = dma.done [#allocation6], 3072
    $region25: #{tpu_custom_call.1} parent=1 // pred_fallthru
      _
    // Predicated region
    $region26: #{tpu_custom_call.1} parent=1 // pred_check
      _
    $region27: #{tpu_custom_call.1} parent=1 // pred_check_branch
      %57 = sbr.rel (0) target = $region29
    $region28: #{tpu_custom_call.1} parent=1 // pred_region
      %58 = dma.done [#allocation6], 3456
    $region29: #{tpu_custom_call.1} parent=1 // pred_fallthru
      _
    %v59 = vld [vmem:[%s3] sm:$0x1]
    %v60 = vld [vmem:[%s3 + $0x1] sm:$0x1]
    %v61 = vld [vmem:[%s3 + $0x2] sm:$0x1]
    %v62 = vld [vmem:[%s3 + $0x3] sm:$0x1]
    %v63 = vlaneseq
    %v64 = vshrl.u32 %v63, 7
    %v65 = vadd.s32 %v64, 8
    %v66 = vadd.s32 %v64, 16
    %v67 = vadd.s32 %v64, 24
    %v68 = vadd.s32 %v64, 32
    %v69 = vadd.s32 %v64, 40
    %vm70 = vcmp.ge.s32.totalorder %v64, 1
    %vm71 = vcmp.ge.s32.totalorder %v65, 1
    %vm72 = vcmp.ge.s32.totalorder %v66, 1
    %vm73 = vcmp.ge.s32.totalorder %v67, 1
    %vm74 = vcmp.ge.s32.totalorder %v68, 1
    %vm75 = vcmp.ge.s32.totalorder %v69, 1
    %vm76 = vcmp.le.s32.totalorder %v64, 16
    %vm77 = vcmp.le.s32.totalorder %v65, 16
    %vm78 = vcmp.le.s32.totalorder %v66, 16
    %vm79 = vcmp.le.s32.totalorder %v67, 16
    %vm80 = vcmp.le.s32.totalorder %v68, 16
    %vm81 = vcmp.le.s32.totalorder %v69, 16
    %vm82 = vmand %vm70, %vm76
    %vm83 = vmand %vm71, %vm77
    %vm84 = vmand %vm72, %vm78
    %vm85 = vmand %vm73, %vm79
    %vm86 = vmand %vm74, %vm80
    %vm87 = vmand %vm75, %vm81
    %vm88 = vcmp.ge.s32.totalorder %v64, 25
    %vm89 = vcmp.ge.s32.totalorder %v65, 25
    %vm90 = vcmp.ge.s32.totalorder %v66, 25
    %vm91 = vcmp.ge.s32.totalorder %v67, 25
    %vm92 = vcmp.ge.s32.totalorder %v68, 25
    %vm93 = vcmp.ge.s32.totalorder %v69, 25
    %vm94 = vcmp.le.s32.totalorder %v64, 40
    %vm95 = vcmp.le.s32.totalorder %v65, 40
    %vm96 = vcmp.le.s32.totalorder %v66, 40
    %vm97 = vcmp.le.s32.totalorder %v67, 40
    %vm98 = vcmp.le.s32.totalorder %v68, 40
    %vm99 = vcmp.le.s32.totalorder %v69, 40
    %vm100 = vmand %vm88, %vm94
    %vm101 = vmand %vm89, %vm95
    %vm102 = vmand %vm90, %vm96
    %vm103 = vmand %vm91, %vm97
    %vm104 = vmand %vm92, %vm98
    %vm105 = vmand %vm93, %vm99
    %vm106 = vmor %vm82, %vm100
    %vm107 = vmor %vm83, %vm101
    %vm108 = vmor %vm84, %vm102
    %vm109 = vmor %vm85, %vm103
    %vm110 = vmor %vm86, %vm104
    %vm111 = vmor %vm87, %vm105
    %v112 = vld [vmem:[#allocation2] sm:$0xff]
    %v113 = vld [vmem:[#allocation2 + $0x8] sm:$0xff]
    %v114 = vld [vmem:[#allocation2 + $0x10] sm:$0xff]
    %v115 = vld [vmem:[#allocation2 + $0x18] sm:$0xff]
    %v116 = vld [vmem:[#allocation2 + $0x20] sm:$0xff]
    %v117 = vld [vmem:[#allocation2 + $0x28] sm:$0xff]
    %vm124 = vcmask 1040384
    %v125 = vrot.slane %v112, 7
    %v126 = vrot.slane %v113, 7
    %v127 = vsel %vm124, %v125, %v126
    %v128 = vrot.slane %v114, 7
    %v129 = vsel %vm124, %v126, %v128
    %v130 = vrot.slane %v115, 7
    %v131 = vsel %vm124, %v128, %v130
    %v132 = vrot.slane %v116, 7
    %v133 = vsel %vm124, %v130, %v132
    %v134 = vrot.slane %v117, 7
    %v135 = vsel %vm124, %v132, %v134
    %v137 = vsel %vm124, 0.0, %v125
    %vm138 = vcmask 1046528
    %v139 = vrot.slane %v112, 1
    %v140 = vrot.slane %v113, 1
    %v141 = vsel %vm138, %v139, %v140
    %v142 = vrot.slane %v114, 1
    %v143 = vsel %vm138, %v140, %v142
    %v144 = vrot.slane %v115, 1
    %v145 = vsel %vm138, %v142, %v144
    %v146 = vrot.slane %v116, 1
    %v147 = vsel %vm138, %v144, %v146
    %v148 = vrot.slane %v117, 1
    %v149 = vsel %vm138, %v146, %v148
    %v151 = vsel %vm138, %v148, 0.0
    %v152 = vld [vmem:[#allocation5] sm:$0xff]
    %v153 = vld [vmem:[#allocation5 + $0x8] sm:$0xff]
    %v154 = vld [vmem:[#allocation5 + $0x10] sm:$0xff]
    %v155 = vld [vmem:[#allocation5 + $0x18] sm:$0xff]
    %v156 = vld [vmem:[#allocation5 + $0x20] sm:$0xff]
    %v157 = vld [vmem:[#allocation5 + $0x28] sm:$0xff]
    %v158 = vld [vmem:[#allocation5 + $0x30] sm:$0xff]
    %v159 = vld [vmem:[#allocation5 + $0x38] sm:$0xff]
    %s160 = scalar_lea.vmem [#allocation5], 64
    %v161 = vld [vmem:[%s160] sm:$0xff]
    %v162 = vld [vmem:[%s160 + $0x8] sm:$0xff]
    %v163 = vld [vmem:[%s160 + $0x10] sm:$0xff]
    %v164 = vld [vmem:[%s160 + $0x18] sm:$0xff]
    %v165 = vld [vmem:[%s160 + $0x20] sm:$0xff]
    %v166 = vld [vmem:[%s160 + $0x28] sm:$0xff]
    %v167 = vld [vmem:[%s160 + $0x30] sm:$0xff]
    %v168 = vld [vmem:[%s160 + $0x38] sm:$0xff]
    %vm169 = vcmask 523264
    %v170 = vsel %vm169, %v112, 0
    %v172 = vsel %vm169, %v113, 0
    %v174 = vsel %vm169, %v114, 0
    %v176 = vsel %vm169, %v115, 0
    %v178 = vsel %vm169, %v116, 0
    %v180 = vsel %vm169, %v117, 0
    %182 = vmatprep.subr.mxu0 0.0
    %183 = vmatpush1.msra.mxu0 0.0
    %184 = vmatprep.subr.mxu0 0.0
    %185 = vmatpush1.msra.mxu0 0.0
    %186 = vmatprep.subr.mxu0 0.0
    %187 = vmatpush1.msra.mxu0 0.0
    %188 = vmatprep.subr.mxu0 0.0
    %189 = vmatpush1.msra.mxu0 0.0
    %190 = vmatprep.subr.mxu0 0.0
    %191 = vmatpush1.msra.mxu0 0.0
    %192 = vmatprep.subr.mxu0 0.0
    %193 = vmatpush1.msra.mxu0 0.0
    %194 = vmatprep.subr.mxu0 0.0
    %195 = vmatpush1.msra.mxu0 0.0
    %196 = vmatprep.subr.mxu0 0.0
    %197 = vmatpush1.msra.mxu0 0.0
    %198 = vmatprep.subr.mxu0 0.0
    %199 = vmatpush1.msra.mxu0 %v168
    %200 = vmatprep.subr.mxu0 0.0
    %201 = vmatpush1.msra.mxu0 %v167
    %202 = vmatprep.subr.mxu0 0.0
    %203 = vmatpush1.msra.mxu0 %v166
    %204 = vmatprep.subr.mxu0 0.0
    %205 = vmatpush1.msra.mxu0 %v165
    %206 = vmatprep.subr.mxu0 0.0
    %207 = vmatpush1.msra.mxu0 %v164
    %208 = vmatprep.subr.mxu0 0.0
    %209 = vmatpush1.msra.mxu0 %v163
    %210 = vmatprep.subr.mxu0 0.0
    %211 = vmatpush1.msra.mxu0 %v162
    %212 = vmatprep.subr.mxu0 0.0
    %213 = vmatpush1.msra.mxu0 %v161
    %214 = vmatprep.subr.mxu0 0.0
    %215 = vmatpush2.msra.mxu0 0.0
    %216 = vmatprep.subr.mxu0 0.0
    %217 = vmatpush2.msra.mxu0 0.0
    %218 = vmatprep.subr.mxu0 0.0
    %219 = vmatpush2.msra.mxu0 0.0
    %220 = vmatprep.subr.mxu0 0.0
    %221 = vmatpush2.msra.mxu0 0.0
    %222 = vmatprep.subr.mxu0 0.0
    %223 = vmatpush2.msra.mxu0 0.0
    %224 = vmatprep.subr.mxu0 0.0
    %225 = vmatpush2.msra.mxu0 0.0
    %226 = vmatprep.subr.mxu0 0.0
    %227 = vmatpush2.msra.mxu0 0.0
    %228 = vmatprep.subr.mxu0 0.0
    %229 = vmatpush2.msra.mxu0 0.0
    %230 = vmatprep.subr.mxu0 0.0
    %231 = vmatpush2.msra.mxu0 0.0
    %232 = vmatprep.subr.mxu0 0.0
    %233 = vmatpush2.msra.mxu0 0.0
    %234 = vmatprep.subr.mxu0 0.0
    %235 = vmatpush2.msra.mxu0 0.0
    %236 = vmatprep.subr.mxu0 0.0
    %237 = vmatpush2.msra.mxu0 0.0
    %238 = vmatprep.subr.mxu0 0.0
    %239 = vmatpush2.msra.mxu0 0.0
    %240 = vmatprep.subr.mxu0 0.0
    %241 = vmatpush2.msra.mxu0 0.0
    %242 = vmatprep.subr.mxu0 0.0
    %243 = vmatpush2.msra.mxu0 0.0
    %244 = vmatprep.subr.mxu0 0.0
    %245 = vmatpush2.msra.mxu0 0.0
    %246 = vmatprep.mubr.f32.mxu0 0.0
    %247 = vmatmul.mubr.f32.gmra.mxu0 %v170
    %v248 = vpop.f32.mrf.mxu0
    %v249 = vadd.f32 0.0, %v248
    %v250 = vpop.f32.mrf.mxu0
    %251 = vmatprep.mubr.f32.mxu0 0.0
    %252 = vmatmul.mubr.f32.gmra.mxu0 %v172
    %v253 = vpop.f32.mrf.mxu0
    %v254 = vadd.f32 0.0, %v253
    %v255 = vpop.f32.mrf.mxu0
    %256 = vmatprep.mubr.f32.mxu0 0.0
    %257 = vmatmul.mubr.f32.gmra.mxu0 %v174
    %v258 = vpop.f32.mrf.mxu0
    %v259 = vadd.f32 0.0, %v258
    %v260 = vpop.f32.mrf.mxu0
    %261 = vmatprep.mubr.f32.mxu0 0.0
    %262 = vmatmul.mubr.f32.gmra.mxu0 %v176
    %v263 = vpop.f32.mrf.mxu0
    %v264 = vadd.f32 0.0, %v263
    %v265 = vpop.f32.mrf.mxu0
    %266 = vmatprep.mubr.f32.mxu0 0.0
    %267 = vmatmul.mubr.f32.gmra.mxu0 %v178
    %v268 = vpop.f32.mrf.mxu0
    %v269 = vadd.f32 0.0, %v268
    %v270 = vpop.f32.mrf.mxu0
    %271 = vmatprep.mubr.f32.mxu0 0.0
    %272 = vmatmul.mubr.f32.gmra.mxu0 %v180
    %v273 = vpop.f32.mrf.mxu0
    %v274 = vadd.f32 0.0, %v273
    %v275 = vpop.f32.mrf.mxu0
    %276 = vdwg.mxu0
    %v278 = vsel %vm169, %v137, 0
    %v280 = vsel %vm169, %v127, 0
    %v282 = vsel %vm169, %v129, 0
    %v284 = vsel %vm169, %v131, 0
    %v286 = vsel %vm169, %v133, 0
    %v288 = vsel %vm169, %v135, 0
    %290 = vmatprep.subr.mxu0 0.0
    %291 = vmatpush1.msra.mxu0 0.0
    %292 = vmatprep.subr.mxu0 0.0
    %293 = vmatpush1.msra.mxu0 0.0
    %294 = vmatprep.subr.mxu0 0.0
    %295 = vmatpush1.msra.mxu0 0.0
    %296 = vmatprep.subr.mxu0 0.0
    %297 = vmatpush1.msra.mxu0 0.0
    %298 = vmatprep.subr.mxu0 0.0
    %299 = vmatpush1.msra.mxu0 0.0
    %300 = vmatprep.subr.mxu0 0.0
    %301 = vmatpush1.msra.mxu0 0.0
    %302 = vmatprep.subr.mxu0 0.0
    %303 = vmatpush1.msra.mxu0 0.0
    %304 = vmatprep.subr.mxu0 0.0
    %305 = vmatpush1.msra.mxu0 0.0
    %306 = vmatprep.subr.mxu0 0.0
    %307 = vmatpush1.msra.mxu0 %v159
    %308 = vmatprep.subr.mxu0 0.0
    %309 = vmatpush1.msra.mxu0 %v158
    %310 = vmatprep.subr.mxu0 0.0
    %311 = vmatpush1.msra.mxu0 %v157
    %312 = vmatprep.subr.mxu0 0.0
    %313 = vmatpush1.msra.mxu0 %v156
    %314 = vmatprep.subr.mxu0 0.0
    %315 = vmatpush1.msra.mxu0 %v155
    %316 = vmatprep.subr.mxu0 0.0
    %317 = vmatpush1.msra.mxu0 %v154
    %318 = vmatprep.subr.mxu0 0.0
    %319 = vmatpush1.msra.mxu0 %v153
    %320 = vmatprep.subr.mxu0 0.0
    %321 = vmatpush1.msra.mxu0 %v152
    %322 = vmatprep.subr.mxu0 0.0
    %323 = vmatpush2.msra.mxu0 0.0
    %324 = vmatprep.subr.mxu0 0.0
    %325 = vmatpush2.msra.mxu0 0.0
    %326 = vmatprep.subr.mxu0 0.0
    %327 = vmatpush2.msra.mxu0 0.0
    %328 = vmatprep.subr.mxu0 0.0
    %329 = vmatpush2.msra.mxu0 0.0
    %330 = vmatprep.subr.mxu0 0.0
    %331 = vmatpush2.msra.mxu0 0.0
    %332 = vmatprep.subr.mxu0 0.0
    %333 = vmatpush2.msra.mxu0 0.0
    %334 = vmatprep.subr.mxu0 0.0
    %335 = vmatpush2.msra.mxu0 0.0
    %336 = vmatprep.subr.mxu0 0.0
    %337 = vmatpush2.msra.mxu0 0.0
    %338 = vmatprep.subr.mxu0 0.0
    %339 = vmatpush2.msra.mxu0 0.0
    %340 = vmatprep.subr.mxu0 0.0
    %341 = vmatpush2.msra.mxu0 0.0
    %342 = vmatprep.subr.mxu0 0.0
    %343 = vmatpush2.msra.mxu0 0.0
    %344 = vmatprep.subr.mxu0 0.0
    %345 = vmatpush2.msra.mxu0 0.0
    %346 = vmatprep.subr.mxu0 0.0
    %347 = vmatpush2.msra.mxu0 0.0
    %348 = vmatprep.subr.mxu0 0.0
    %349 = vmatpush2.msra.mxu0 0.0
    %350 = vmatprep.subr.mxu0 0.0
    %351 = vmatpush2.msra.mxu0 0.0
    %352 = vmatprep.subr.mxu0 0.0
    %353 = vmatpush2.msra.mxu0 0.0
    %354 = vmatprep.mubr.f32.mxu0 0.0
    %355 = vmatmul.mubr.f32.gmra.mxu0 %v278
    %v356 = vpop.f32.mrf.mxu0
    %v357 = vadd.f32 %v249, %v356
    %v358 = vpop.f32.mrf.mxu0
    %359 = vmatprep.mubr.f32.mxu0 0.0
    %360 = vmatmul.mubr.f32.gmra.mxu0 %v280
    %v361 = vpop.f32.mrf.mxu0
    %v362 = vadd.f32 %v254, %v361
    %v363 = vpop.f32.mrf.mxu0
    %364 = vmatprep.mubr.f32.mxu0 0.0
    %365 = vmatmul.mubr.f32.gmra.mxu0 %v282
    %v366 = vpop.f32.mrf.mxu0
    %v367 = vadd.f32 %v259, %v366
    %v368 = vpop.f32.mrf.mxu0
    %369 = vmatprep.mubr.f32.mxu0 0.0
    %370 = vmatmul.mubr.f32.gmra.mxu0 %v284
    %v371 = vpop.f32.mrf.mxu0
    %v372 = vadd.f32 %v264, %v371
    %v373 = vpop.f32.mrf.mxu0
    %374 = vmatprep.mubr.f32.mxu0 0.0
    %375 = vmatmul.mubr.f32.gmra.mxu0 %v286
    %v376 = vpop.f32.mrf.mxu0
    %v377 = vadd.f32 %v269, %v376
    %v378 = vpop.f32.mrf.mxu0
    %379 = vmatprep.mubr.f32.mxu0 0.0
    %380 = vmatmul.mubr.f32.gmra.mxu0 %v288
    %v381 = vpop.f32.mrf.mxu0
    %v382 = vadd.f32 %v274, %v381
    %v383 = vpop.f32.mrf.mxu0
    %384 = vdwg.mxu0
    %s385 = scalar_lea.vmem [#allocation5], 128
    %v386 = vld [vmem:[%s385] sm:$0xff]
    %v387 = vld [vmem:[%s385 + $0x8] sm:$0xff]
    %v388 = vld [vmem:[%s385 + $0x10] sm:$0xff]
    %v389 = vld [vmem:[%s385 + $0x18] sm:$0xff]
    %v390 = vld [vmem:[%s385 + $0x20] sm:$0xff]
    %v391 = vld [vmem:[%s385 + $0x28] sm:$0xff]
    %v392 = vld [vmem:[%s385 + $0x30] sm:$0xff]
    %v393 = vld [vmem:[%s385 + $0x38] sm:$0xff]
    %v394 = vsel %vm169, %v141, 0
    %v396 = vsel %vm169, %v143, 0
    %v398 = vsel %vm169, %v145, 0
    %v400 = vsel %vm169, %v147, 0
    %v402 = vsel %vm169, %v149, 0
    %v405 = vsel %vm169, %v151, 0
    %407 = vmatprep.subr.mxu0 0.0
    %408 = vmatpush1.msra.mxu0 0.0
    %409 = vmatprep.subr.mxu0 0.0
    %410 = vmatpush1.msra.mxu0 0.0
    %411 = vmatprep.subr.mxu0 0.0
    %412 = vmatpush1.msra.mxu0 0.0
    %413 = vmatprep.subr.mxu0 0.0
    %414 = vmatpush1.msra.mxu0 0.0
    %415 = vmatprep.subr.mxu0 0.0
    %416 = vmatpush1.msra.mxu0 0.0
    %417 = vmatprep.subr.mxu0 0.0
    %418 = vmatpush1.msra.mxu0 0.0
    %419 = vmatprep.subr.mxu0 0.0
    %420 = vmatpush1.msra.mxu0 0.0
    %421 = vmatprep.subr.mxu0 0.0
    %422 = vmatpush1.msra.mxu0 0.0
    %423 = vmatprep.subr.mxu0 0.0
    %424 = vmatpush1.msra.mxu0 %v393
    %425 = vmatprep.subr.mxu0 0.0
    %426 = vmatpush1.msra.mxu0 %v392
    %427 = vmatprep.subr.mxu0 0.0
    %428 = vmatpush1.msra.mxu0 %v391
    %429 = vmatprep.subr.mxu0 0.0
    %430 = vmatpush1.msra.mxu0 %v390
    %431 = vmatprep.subr.mxu0 0.0
    %432 = vmatpush1.msra.mxu0 %v389
    %433 = vmatprep.subr.mxu0 0.0
    %434 = vmatpush1.msra.mxu0 %v388
    %435 = vmatprep.subr.mxu0 0.0
    %436 = vmatpush1.msra.mxu0 %v387
    %437 = vmatprep.subr.mxu0 0.0
    %438 = vmatpush1.msra.mxu0 %v386
    %439 = vmatprep.subr.mxu0 0.0
    %440 = vmatpush2.msra.mxu0 0.0
    %441 = vmatprep.subr.mxu0 0.0
    %442 = vmatpush2.msra.mxu0 0.0
    %443 = vmatprep.subr.mxu0 0.0
    %444 = vmatpush2.msra.mxu0 0.0
    %445 = vmatprep.subr.mxu0 0.0
    %446 = vmatpush2.msra.mxu0 0.0
    %447 = vmatprep.subr.mxu0 0.0
    %448 = vmatpush2.msra.mxu0 0.0
    %449 = vmatprep.subr.mxu0 0.0
    %450 = vmatpush2.msra.mxu0 0.0
    %451 = vmatprep.subr.mxu0 0.0
    %452 = vmatpush2.msra.mxu0 0.0
    %453 = vmatprep.subr.mxu0 0.0
    %454 = vmatpush2.msra.mxu0 0.0
    %455 = vmatprep.subr.mxu0 0.0
    %456 = vmatpush2.msra.mxu0 0.0
    %457 = vmatprep.subr.mxu0 0.0
    %458 = vmatpush2.msra.mxu0 0.0
    %459 = vmatprep.subr.mxu0 0.0
    %460 = vmatpush2.msra.mxu0 0.0
    %461 = vmatprep.subr.mxu0 0.0
    %462 = vmatpush2.msra.mxu0 0.0
    %463 = vmatprep.subr.mxu0 0.0
    %464 = vmatpush2.msra.mxu0 0.0
    %465 = vmatprep.subr.mxu0 0.0
    %466 = vmatpush2.msra.mxu0 0.0
    %467 = vmatprep.subr.mxu0 0.0
    %468 = vmatpush2.msra.mxu0 0.0
    %469 = vmatprep.subr.mxu0 0.0
    %470 = vmatpush2.msra.mxu0 0.0
    %471 = vmatprep.mubr.f32.mxu0 0.0
    %472 = vmatmul.mubr.f32.gmra.mxu0 %v394
    %v473 = vpop.f32.mrf.mxu0
    %v474 = vadd.f32 0.0, %v473
    %v475 = vpop.f32.mrf.mxu0
    %476 = vmatprep.mubr.f32.mxu0 0.0
    %477 = vmatmul.mubr.f32.gmra.mxu0 %v396
    %v478 = vpop.f32.mrf.mxu0
    %v479 = vadd.f32 0.0, %v478
    %v480 = vpop.f32.mrf.mxu0
    %481 = vmatprep.mubr.f32.mxu0 0.0
    %482 = vmatmul.mubr.f32.gmra.mxu0 %v398
    %v483 = vpop.f32.mrf.mxu0
    %v484 = vadd.f32 0.0, %v483
    %v485 = vpop.f32.mrf.mxu0
    %486 = vmatprep.mubr.f32.mxu0 0.0
    %487 = vmatmul.mubr.f32.gmra.mxu0 %v400
    %v488 = vpop.f32.mrf.mxu0
    %v489 = vadd.f32 0.0, %v488
    %v490 = vpop.f32.mrf.mxu0
    %491 = vmatprep.mubr.f32.mxu0 0.0
    %492 = vmatmul.mubr.f32.gmra.mxu0 %v402
    %v493 = vpop.f32.mrf.mxu0
    %v494 = vadd.f32 0.0, %v493
    %v495 = vpop.f32.mrf.mxu0
    %496 = vmatprep.mubr.f32.mxu0 0.0
    %497 = vmatmul.mubr.f32.gmra.mxu0 %v405
    %v498 = vpop.f32.mrf.mxu0
    %v499 = vadd.f32 0.0, %v498
    %v500 = vpop.f32.mrf.mxu0
    %501 = vdwg.mxu0
    %v502 = vadd.f32 %v357, %v474
    %v503 = vadd.f32 %v362, %v479
    %v504 = vadd.f32 %v367, %v484
    %v505 = vadd.f32 %v372, %v489
    %v506 = vadd.f32 %v377, %v494
    %v507 = vadd.f32 %v382, %v499
    %v508 = vlaneseq
    %v509 = vshrl.u32 %v508, 7
    %v510 = vsub.s32 0, %v509
    %v511 = vrot.slane %v59, %v510
    %v512 = vadd.f32 %v502, %v511
    %v513 = vadd.f32 %v503, %v511
    %v514 = vadd.f32 %v504, %v511
    %v515 = vadd.f32 %v505, %v511
    %v516 = vadd.f32 %v506, %v511
    %v517 = vadd.f32 %v507, %v511
    %vm518 = vcmp.ge.f32.partialorder %v512, 0.0
    %vm519 = vcmp.ge.f32.partialorder %v513, 0.0
    %vm520 = vcmp.ge.f32.partialorder %v514, 0.0
    %vm521 = vcmp.ge.f32.partialorder %v515, 0.0
    %vm522 = vcmp.ge.f32.partialorder %v516, 0.0
    %vm523 = vcmp.ge.f32.partialorder %v517, 0.0
    %v524 = vlaneseq
    %v525 = vshrl.u32 %v524, 7
    %v526 = vsub.s32 0, %v525
    %v527 = vrot.slane %v60, %v526
    %v528 = vmul.f32 %v527, %v512
    %v529 = vmul.f32 %v527, %v513
    %v530 = vmul.f32 %v527, %v514
    %v531 = vmul.f32 %v527, %v515
    %v532 = vmul.f32 %v527, %v516
    %v533 = vmul.f32 %v527, %v517
    %v534 = vsel %vm518, %v512, %v528
    %v535 = vsel %vm519, %v513, %v529
    %v536 = vsel %vm520, %v514, %v530
    %v537 = vsel %vm521, %v515, %v531
    %v538 = vsel %vm522, %v516, %v532
    %v539 = vsel %vm523, %v517, %v533
    %v540 = vsel %vm106, 1, 0
    %v541 = vsel %vm107, 1, 0
    %v542 = vsel %vm108, 1, 0
    %v543 = vsel %vm109, 1, 0
    %v544 = vsel %vm110, 1, 0
    %v545 = vsel %vm111, 1, 0
    %vm546 = vcmp.eq.s32.totalorder %v540, 1
    %vm547 = vcmp.eq.s32.totalorder %v541, 1
    %vm548 = vcmp.eq.s32.totalorder %v542, 1
    %vm549 = vcmp.eq.s32.totalorder %v543, 1
    %vm550 = vcmp.eq.s32.totalorder %v544, 1
    %vm551 = vcmp.eq.s32.totalorder %v545, 1
    %v552 = vsel %vm546, %v534, 0.0
    %v553 = vsel %vm547, %v535, 0.0
    %v554 = vsel %vm548, %v536, 0.0
    %v555 = vsel %vm549, %v537, 0.0
    %v556 = vsel %vm550, %v538, 0.0
    %v557 = vsel %vm551, %v539, 0.0
    %v564 = vrot.slane %v552, 7
    %v565 = vrot.slane %v553, 7
    %v566 = vsel %vm124, %v564, %v565
    %v567 = vrot.slane %v554, 7
    %v568 = vsel %vm124, %v565, %v567
    %v569 = vrot.slane %v555, 7
    %v570 = vsel %vm124, %v567, %v569
    %v571 = vrot.slane %v556, 7
    %v572 = vsel %vm124, %v569, %v571
    %v573 = vrot.slane %v557, 7
    %v574 = vsel %vm124, %v571, %v573
    %v576 = vsel %vm124, 0.0, %v564
    %v577 = vrot.slane %v552, 1
    %v578 = vrot.slane %v553, 1
    %v579 = vsel %vm138, %v577, %v578
    %v580 = vrot.slane %v554, 1
    %v581 = vsel %vm138, %v578, %v580
    %v582 = vrot.slane %v555, 1
    %v583 = vsel %vm138, %v580, %v582
    %v584 = vrot.slane %v556, 1
    %v585 = vsel %vm138, %v582, %v584
    %v586 = vrot.slane %v557, 1
    %v587 = vsel %vm138, %v584, %v586
    %v589 = vsel %vm138, %v586, 0.0
    %v590 = vld [vmem:[#allocation7] sm:$0xff]
    %v591 = vld [vmem:[#allocation7 + $0x8] sm:$0xff]
    %v592 = vld [vmem:[#allocation7 + $0x10] sm:$0xff]
    %v593 = vld [vmem:[#allocation7 + $0x18] sm:$0xff]
    %v594 = vld [vmem:[#allocation7 + $0x20] sm:$0xff]
    %v595 = vld [vmem:[#allocation7 + $0x28] sm:$0xff]
    %v596 = vld [vmem:[#allocation7 + $0x30] sm:$0xff]
    %v597 = vld [vmem:[#allocation7 + $0x38] sm:$0xff]
    %v598 = vld [vmem:[#allocation7 + $0x40] sm:$0xff]
    %s599 = scalar_lea.vmem [#allocation7], 72
    %v600 = vld [vmem:[%s599] sm:$0xff]
    %v601 = vld [vmem:[%s599 + $0x8] sm:$0xff]
    %v602 = vld [vmem:[%s599 + $0x10] sm:$0xff]
    %v603 = vld [vmem:[%s599 + $0x18] sm:$0xff]
    %v604 = vld [vmem:[%s599 + $0x20] sm:$0xff]
    %v605 = vld [vmem:[%s599 + $0x28] sm:$0xff]
    %v606 = vld [vmem:[%s599 + $0x30] sm:$0xff]
    %v607 = vld [vmem:[%s599 + $0x38] sm:$0xff]
    %v608 = vld [vmem:[%s599 + $0x40] sm:$0xff]
    %vm609 = vcmask 588800
    %v610 = vsel %vm609, %v552, 0
    %v612 = vsel %vm609, %v553, 0
    %v614 = vsel %vm609, %v554, 0
    %v616 = vsel %vm609, %v555, 0
    %v618 = vsel %vm609, %v556, 0
    %v620 = vsel %vm609, %v557, 0
    %622 = vmatprep.subr.mxu0 0.0
    %623 = vmatpush1.msra.mxu0 0.0
    %624 = vmatprep.subr.mxu0 0.0
    %625 = vmatpush1.msra.mxu0 0.0
    %626 = vmatprep.subr.mxu0 0.0
    %627 = vmatpush1.msra.mxu0 0.0
    %628 = vmatprep.subr.mxu0 0.0
    %629 = vmatpush1.msra.mxu0 0.0
    %630 = vmatprep.subr.mxu0 0.0
    %631 = vmatpush1.msra.mxu0 0.0
    %632 = vmatprep.subr.mxu0 0.0
    %633 = vmatpush1.msra.mxu0 0.0
    %634 = vmatprep.subr.mxu0 0.0
    %635 = vmatpush1.msra.mxu0 0.0
    %636 = vmatprep.subr.mxu0 0.0
    %637 = vmatpush1.msra.mxu0 %v608
    %638 = vmatprep.subr.mxu0 0.0
    %639 = vmatpush1.msra.mxu0 %v607
    %640 = vmatprep.subr.mxu0 0.0
    %641 = vmatpush1.msra.mxu0 %v606
    %642 = vmatprep.subr.mxu0 0.0
    %643 = vmatpush1.msra.mxu0 %v605
    %644 = vmatprep.subr.mxu0 0.0
    %645 = vmatpush1.msra.mxu0 %v604
    %646 = vmatprep.subr.mxu0 0.0
    %647 = vmatpush1.msra.mxu0 %v603
    %648 = vmatprep.subr.mxu0 0.0
    %649 = vmatpush1.msra.mxu0 %v602
    %650 = vmatprep.subr.mxu0 0.0
    %651 = vmatpush1.msra.mxu0 %v601
    %652 = vmatprep.subr.mxu0 0.0
    %653 = vmatpush1.msra.mxu0 %v600
    %654 = vmatprep.subr.mxu0 0.0
    %655 = vmatpush2.msra.mxu0 0.0
    %656 = vmatprep.subr.mxu0 0.0
    %657 = vmatpush2.msra.mxu0 0.0
    %658 = vmatprep.subr.mxu0 0.0
    %659 = vmatpush2.msra.mxu0 0.0
    %660 = vmatprep.subr.mxu0 0.0
    %661 = vmatpush2.msra.mxu0 0.0
    %662 = vmatprep.subr.mxu0 0.0
    %663 = vmatpush2.msra.mxu0 0.0
    %664 = vmatprep.subr.mxu0 0.0
    %665 = vmatpush2.msra.mxu0 0.0
    %666 = vmatprep.subr.mxu0 0.0
    %667 = vmatpush2.msra.mxu0 0.0
    %668 = vmatprep.subr.mxu0 0.0
    %669 = vmatpush2.msra.mxu0 0.0
    %670 = vmatprep.subr.mxu0 0.0
    %671 = vmatpush2.msra.mxu0 0.0
    %672 = vmatprep.subr.mxu0 0.0
    %673 = vmatpush2.msra.mxu0 0.0
    %674 = vmatprep.subr.mxu0 0.0
    %675 = vmatpush2.msra.mxu0 0.0
    %676 = vmatprep.subr.mxu0 0.0
    %677 = vmatpush2.msra.mxu0 0.0
    %678 = vmatprep.subr.mxu0 0.0
    %679 = vmatpush2.msra.mxu0 0.0
    %680 = vmatprep.subr.mxu0 0.0
    %681 = vmatpush2.msra.mxu0 0.0
    %682 = vmatprep.subr.mxu0 0.0
    %683 = vmatpush2.msra.mxu0 0.0
    %684 = vmatprep.subr.mxu0 0.0
    %685 = vmatpush2.msra.mxu0 0.0
    %686 = vmatprep.mubr.f32.mxu0 0.0
    %687 = vmatmul.mubr.f32.gmra.mxu0 %v610
    %v688 = vpop.f32.mrf.mxu0
    %v689 = vadd.f32 0.0, %v688
    %v690 = vpop.f32.mrf.mxu0
    %691 = vmatprep.mubr.f32.mxu0 0.0
    %692 = vmatmul.mubr.f32.gmra.mxu0 %v612
    %v693 = vpop.f32.mrf.mxu0
    %v694 = vadd.f32 0.0, %v693
    %v695 = vpop.f32.mrf.mxu0
    %696 = vmatprep.mubr.f32.mxu0 0.0
    %697 = vmatmul.mubr.f32.gmra.mxu0 %v614
    %v698 = vpop.f32.mrf.mxu0
    %v699 = vadd.f32 0.0, %v698
    %v700 = vpop.f32.mrf.mxu0
    %701 = vmatprep.mubr.f32.mxu0 0.0
    %702 = vmatmul.mubr.f32.gmra.mxu0 %v616
    %v703 = vpop.f32.mrf.mxu0
    %v704 = vadd.f32 0.0, %v703
    %v705 = vpop.f32.mrf.mxu0
    %706 = vmatprep.mubr.f32.mxu0 0.0
    %707 = vmatmul.mubr.f32.gmra.mxu0 %v618
    %v708 = vpop.f32.mrf.mxu0
    %v709 = vadd.f32 0.0, %v708
    %v710 = vpop.f32.mrf.mxu0
    %711 = vmatprep.mubr.f32.mxu0 0.0
    %712 = vmatmul.mubr.f32.gmra.mxu0 %v620
    %v713 = vpop.f32.mrf.mxu0
    %v714 = vadd.f32 0.0, %v713
    %v715 = vpop.f32.mrf.mxu0
    %716 = vdwg.mxu0
    %v718 = vsel %vm609, %v576, 0
    %v720 = vsel %vm609, %v566, 0
    %v722 = vsel %vm609, %v568, 0
    %v724 = vsel %vm609, %v570, 0
    %v726 = vsel %vm609, %v572, 0
    %v728 = vsel %vm609, %v574, 0
    %730 = vmatprep.subr.mxu0 0.0
    %731 = vmatpush1.msra.mxu0 0.0
    %732 = vmatprep.subr.mxu0 0.0
    %733 = vmatpush1.msra.mxu0 0.0
    %734 = vmatprep.subr.mxu0 0.0
    %735 = vmatpush1.msra.mxu0 0.0
    %736 = vmatprep.subr.mxu0 0.0
    %737 = vmatpush1.msra.mxu0 0.0
    %738 = vmatprep.subr.mxu0 0.0
    %739 = vmatpush1.msra.mxu0 0.0
    %740 = vmatprep.subr.mxu0 0.0
    %741 = vmatpush1.msra.mxu0 0.0
    %742 = vmatprep.subr.mxu0 0.0
    %743 = vmatpush1.msra.mxu0 0.0
    %744 = vmatprep.subr.mxu0 0.0
    %745 = vmatpush1.msra.mxu0 %v598
    %746 = vmatprep.subr.mxu0 0.0
    %747 = vmatpush1.msra.mxu0 %v597
    %748 = vmatprep.subr.mxu0 0.0
    %749 = vmatpush1.msra.mxu0 %v596
    %750 = vmatprep.subr.mxu0 0.0
    %751 = vmatpush1.msra.mxu0 %v595
    %752 = vmatprep.subr.mxu0 0.0
    %753 = vmatpush1.msra.mxu0 %v594
    %754 = vmatprep.subr.mxu0 0.0
    %755 = vmatpush1.msra.mxu0 %v593
    %756 = vmatprep.subr.mxu0 0.0
    %757 = vmatpush1.msra.mxu0 %v592
    %758 = vmatprep.subr.mxu0 0.0
    %759 = vmatpush1.msra.mxu0 %v591
    %760 = vmatprep.subr.mxu0 0.0
    %761 = vmatpush1.msra.mxu0 %v590
    %762 = vmatprep.subr.mxu0 0.0
    %763 = vmatpush2.msra.mxu0 0.0
    %764 = vmatprep.subr.mxu0 0.0
    %765 = vmatpush2.msra.mxu0 0.0
    %766 = vmatprep.subr.mxu0 0.0
    %767 = vmatpush2.msra.mxu0 0.0
    %768 = vmatprep.subr.mxu0 0.0
    %769 = vmatpush2.msra.mxu0 0.0
    %770 = vmatprep.subr.mxu0 0.0
    %771 = vmatpush2.msra.mxu0 0.0
    %772 = vmatprep.subr.mxu0 0.0
    %773 = vmatpush2.msra.mxu0 0.0
    %774 = vmatprep.subr.mxu0 0.0
    %775 = vmatpush2.msra.mxu0 0.0
    %776 = vmatprep.subr.mxu0 0.0
    %777 = vmatpush2.msra.mxu0 0.0
    %778 = vmatprep.subr.mxu0 0.0
    %779 = vmatpush2.msra.mxu0 0.0
    %780 = vmatprep.subr.mxu0 0.0
    %781 = vmatpush2.msra.mxu0 0.0
    %782 = vmatprep.subr.mxu0 0.0
    %783 = vmatpush2.msra.mxu0 0.0
    %784 = vmatprep.subr.mxu0 0.0
    %785 = vmatpush2.msra.mxu0 0.0
    %786 = vmatprep.subr.mxu0 0.0
    %787 = vmatpush2.msra.mxu0 0.0
    %788 = vmatprep.subr.mxu0 0.0
    %789 = vmatpush2.msra.mxu0 0.0
    %790 = vmatprep.subr.mxu0 0.0
    %791 = vmatpush2.msra.mxu0 0.0
    %792 = vmatprep.subr.mxu0 0.0
    %793 = vmatpush2.msra.mxu0 0.0
    %794 = vmatprep.mubr.f32.mxu0 0.0
    %795 = vmatmul.mubr.f32.gmra.mxu0 %v718
    %v796 = vpop.f32.mrf.mxu0
    %v797 = vadd.f32 %v689, %v796
    %v798 = vpop.f32.mrf.mxu0
    %799 = vmatprep.mubr.f32.mxu0 0.0
    %800 = vmatmul.mubr.f32.gmra.mxu0 %v720
    %v801 = vpop.f32.mrf.mxu0
    %v802 = vadd.f32 %v694, %v801
    %v803 = vpop.f32.mrf.mxu0
    %804 = vmatprep.mubr.f32.mxu0 0.0
    %805 = vmatmul.mubr.f32.gmra.mxu0 %v722
    %v806 = vpop.f32.mrf.mxu0
    %v807 = vadd.f32 %v699, %v806
    %v808 = vpop.f32.mrf.mxu0
    %809 = vmatprep.mubr.f32.mxu0 0.0
    %810 = vmatmul.mubr.f32.gmra.mxu0 %v724
    %v811 = vpop.f32.mrf.mxu0
    %v812 = vadd.f32 %v704, %v811
    %v813 = vpop.f32.mrf.mxu0
    %814 = vmatprep.mubr.f32.mxu0 0.0
    %815 = vmatmul.mubr.f32.gmra.mxu0 %v726
    %v816 = vpop.f32.mrf.mxu0
    %v817 = vadd.f32 %v709, %v816
    %v818 = vpop.f32.mrf.mxu0
    %819 = vmatprep.mubr.f32.mxu0 0.0
    %820 = vmatmul.mubr.f32.gmra.mxu0 %v728
    %v821 = vpop.f32.mrf.mxu0
    %v822 = vadd.f32 %v714, %v821
    %v823 = vpop.f32.mrf.mxu0
    %824 = vdwg.mxu0
    %s825 = scalar_lea.vmem [#allocation7], 144
    %v826 = vld [vmem:[%s825] sm:$0xff]
    %v827 = vld [vmem:[%s825 + $0x8] sm:$0xff]
    %v828 = vld [vmem:[%s825 + $0x10] sm:$0xff]
    %v829 = vld [vmem:[%s825 + $0x18] sm:$0xff]
    %v830 = vld [vmem:[%s825 + $0x20] sm:$0xff]
    %v831 = vld [vmem:[%s825 + $0x28] sm:$0xff]
    %v832 = vld [vmem:[%s825 + $0x30] sm:$0xff]
    %v833 = vld [vmem:[%s825 + $0x38] sm:$0xff]
    %v834 = vld [vmem:[%s825 + $0x40] sm:$0xff]
    %v835 = vsel %vm609, %v579, 0
    %v837 = vsel %vm609, %v581, 0
    %v839 = vsel %vm609, %v583, 0
    %v841 = vsel %vm609, %v585, 0
    %v843 = vsel %vm609, %v587, 0
    %v846 = vsel %vm609, %v589, 0
    %848 = vmatprep.subr.mxu0 0.0
    %849 = vmatpush1.msra.mxu0 0.0
    %850 = vmatprep.subr.mxu0 0.0
    %851 = vmatpush1.msra.mxu0 0.0
    %852 = vmatprep.subr.mxu0 0.0
    %853 = vmatpush1.msra.mxu0 0.0
    %854 = vmatprep.subr.mxu0 0.0
    %855 = vmatpush1.msra.mxu0 0.0
    %856 = vmatprep.subr.mxu0 0.0
    %857 = vmatpush1.msra.mxu0 0.0
    %858 = vmatprep.subr.mxu0 0.0
    %859 = vmatpush1.msra.mxu0 0.0
    %860 = vmatprep.subr.mxu0 0.0
    %861 = vmatpush1.msra.mxu0 0.0
    %862 = vmatprep.subr.mxu0 0.0
    %863 = vmatpush1.msra.mxu0 %v834
    %864 = vmatprep.subr.mxu0 0.0
    %865 = vmatpush1.msra.mxu0 %v833
    %866 = vmatprep.subr.mxu0 0.0
    %867 = vmatpush1.msra.mxu0 %v832
    %868 = vmatprep.subr.mxu0 0.0
    %869 = vmatpush1.msra.mxu0 %v831
    %870 = vmatprep.subr.mxu0 0.0
    %871 = vmatpush1.msra.mxu0 %v830
    %872 = vmatprep.subr.mxu0 0.0
    %873 = vmatpush1.msra.mxu0 %v829
    %874 = vmatprep.subr.mxu0 0.0
    %875 = vmatpush1.msra.mxu0 %v828
    %876 = vmatprep.subr.mxu0 0.0
    %877 = vmatpush1.msra.mxu0 %v827
    %878 = vmatprep.subr.mxu0 0.0
    %879 = vmatpush1.msra.mxu0 %v826
    %880 = vmatprep.subr.mxu0 0.0
    %881 = vmatpush2.msra.mxu0 0.0
    %882 = vmatprep.subr.mxu0 0.0
    %883 = vmatpush2.msra.mxu0 0.0
    %884 = vmatprep.subr.mxu0 0.0
    %885 = vmatpush2.msra.mxu0 0.0
    %886 = vmatprep.subr.mxu0 0.0
    %887 = vmatpush2.msra.mxu0 0.0
    %888 = vmatprep.subr.mxu0 0.0
    %889 = vmatpush2.msra.mxu0 0.0
    %890 = vmatprep.subr.mxu0 0.0
    %891 = vmatpush2.msra.mxu0 0.0
    %892 = vmatprep.subr.mxu0 0.0
    %893 = vmatpush2.msra.mxu0 0.0
    %894 = vmatprep.subr.mxu0 0.0
    %895 = vmatpush2.msra.mxu0 0.0
    %896 = vmatprep.subr.mxu0 0.0
    %897 = vmatpush2.msra.mxu0 0.0
    %898 = vmatprep.subr.mxu0 0.0
    %899 = vmatpush2.msra.mxu0 0.0
    %900 = vmatprep.subr.mxu0 0.0
    %901 = vmatpush2.msra.mxu0 0.0
    %902 = vmatprep.subr.mxu0 0.0
    %903 = vmatpush2.msra.mxu0 0.0
    %904 = vmatprep.subr.mxu0 0.0
    %905 = vmatpush2.msra.mxu0 0.0
    %906 = vmatprep.subr.mxu0 0.0
    %907 = vmatpush2.msra.mxu0 0.0
    %908 = vmatprep.subr.mxu0 0.0
    %909 = vmatpush2.msra.mxu0 0.0
    %910 = vmatprep.subr.mxu0 0.0
    %911 = vmatpush2.msra.mxu0 0.0
    %912 = vmatprep.mubr.f32.mxu0 0.0
    %913 = vmatmul.mubr.f32.gmra.mxu0 %v835
    %v914 = vpop.f32.mrf.mxu0
    %v915 = vadd.f32 0.0, %v914
    %v916 = vpop.f32.mrf.mxu0
    %917 = vmatprep.mubr.f32.mxu0 0.0
    %918 = vmatmul.mubr.f32.gmra.mxu0 %v837
    %v919 = vpop.f32.mrf.mxu0
    %v920 = vadd.f32 0.0, %v919
    %v921 = vpop.f32.mrf.mxu0
    %922 = vmatprep.mubr.f32.mxu0 0.0
    %923 = vmatmul.mubr.f32.gmra.mxu0 %v839
    %v924 = vpop.f32.mrf.mxu0
    %v925 = vadd.f32 0.0, %v924
    %v926 = vpop.f32.mrf.mxu0
    %927 = vmatprep.mubr.f32.mxu0 0.0
    %928 = vmatmul.mubr.f32.gmra.mxu0 %v841
    %v929 = vpop.f32.mrf.mxu0
    %v930 = vadd.f32 0.0, %v929
    %v931 = vpop.f32.mrf.mxu0
    %932 = vmatprep.mubr.f32.mxu0 0.0
    %933 = vmatmul.mubr.f32.gmra.mxu0 %v843
    %v934 = vpop.f32.mrf.mxu0
    %v935 = vadd.f32 0.0, %v934
    %v936 = vpop.f32.mrf.mxu0
    %937 = vmatprep.mubr.f32.mxu0 0.0
    %938 = vmatmul.mubr.f32.gmra.mxu0 %v846
    %v939 = vpop.f32.mrf.mxu0
    %v940 = vadd.f32 0.0, %v939
    %v941 = vpop.f32.mrf.mxu0
    %942 = vdwg.mxu0
    %v943 = vadd.f32 %v797, %v915
    %v944 = vadd.f32 %v802, %v920
    %v945 = vadd.f32 %v807, %v925
    %v946 = vadd.f32 %v812, %v930
    %v947 = vadd.f32 %v817, %v935
    %v948 = vadd.f32 %v822, %v940
    %v949 = vlaneseq
    %v950 = vshrl.u32 %v949, 7
    %v951 = vsub.s32 0, %v950
    %v952 = vrot.slane %v61, %v951
    %v953 = vadd.f32 %v943, %v952
    %v954 = vadd.f32 %v944, %v952
    %v955 = vadd.f32 %v945, %v952
    %v956 = vadd.f32 %v946, %v952
    %v957 = vadd.f32 %v947, %v952
    %v958 = vadd.f32 %v948, %v952
    %vm959 = vcmp.ge.f32.partialorder %v953, 0.0
    %vm960 = vcmp.ge.f32.partialorder %v954, 0.0
    %vm961 = vcmp.ge.f32.partialorder %v955, 0.0
    %vm962 = vcmp.ge.f32.partialorder %v956, 0.0
    %vm963 = vcmp.ge.f32.partialorder %v957, 0.0
    %vm964 = vcmp.ge.f32.partialorder %v958, 0.0
    %v965 = vlaneseq
    %v966 = vshrl.u32 %v965, 7
    %v967 = vsub.s32 0, %v966
    %v968 = vrot.slane %v62, %v967
    %v969 = vmul.f32 %v968, %v953
    %v970 = vmul.f32 %v968, %v954
    %v971 = vmul.f32 %v968, %v955
    %v972 = vmul.f32 %v968, %v956
    %v973 = vmul.f32 %v968, %v957
    %v974 = vmul.f32 %v968, %v958
    %v975 = vsel %vm959, %v953, %v969
    %v976 = vsel %vm960, %v954, %v970
    %v977 = vsel %vm961, %v955, %v971
    %v978 = vsel %vm962, %v956, %v972
    %v979 = vsel %vm963, %v957, %v973
    %v980 = vsel %vm964, %v958, %v974
    %981 = vst [vmem:[#allocation8] sm:$0xff] %v975
    %982 = vst [vmem:[#allocation8 + $0x8] sm:$0xff] %v976
    %983 = vst [vmem:[#allocation8 + $0x10] sm:$0xff] %v977
    %984 = vst [vmem:[#allocation8 + $0x18] sm:$0xff] %v978
    %985 = vst [vmem:[#allocation8 + $0x20] sm:$0xff] %v979
    %986 = vst [vmem:[#allocation8 + $0x28] sm:$0xff] %v980
    // Predicated region
    $region30: #{tpu_custom_call.1} parent=1 // pred_check
      _
    $region31: #{tpu_custom_call.1} parent=1 // pred_check_branch
      %988 = sbr.rel (0) target = $region33
    $region32: #{tpu_custom_call.1} parent=1 // pred_region
      %s990 = ssub.s32 768, 768
      %991 = vsyncadd [#allocation4], %s990
      %s992 = sshll.u32 [#allocation8], 4
      %s993 = int_to_ptr.vmem [resolvable:$true] %s992
      %998 = dma.vmem_to_hbm [thread:$0]  %s993, 768, %s4, [#allocation4], 128, 128, 8
    $region33: #{tpu_custom_call.1} parent=1 // pred_fallthru
      _
    // Predicated region
    $region34: #{tpu_custom_call.1} parent=1 // pred_check
      _
    $region35: #{tpu_custom_call.1} parent=1 // pred_check_branch
      %1000 = sbr.rel (0) target = $region37
    $region36: #{tpu_custom_call.1} parent=1 // pred_region
      %1001 = dma.done [#allocation4], 768
    $region37: #{tpu_custom_call.1} parent=1 // pred_fallthru
      _
    %1002 = vsyncpa [#allocation3], 1
    %1003 = vsyncpa [#allocation6], 1
    %1004 = vsyncpa [#allocation4], 1

</llo_original>
